<compile_context>
chip_gen: v6e
topology: v6e:2x2x1
jax: 0.10.0
libtpu: 0.0.40
codegen_flags: <defaults>
</compile_context>

<pallas_src>
import functools

import jax
import jax.numpy as jnp
from jax.experimental import pallas as pl
from jax.experimental.pallas import tpu as pltpu


HIDDEN = 256
OUT_DIM = 784 * 3        # 2352 = 18*128 + 48  (ragged last lane tile)
OUT_PAD = 19 * 128       # 2432: lane-dense padded output width


def _round_up(x, m):
    return (x + m - 1) // m * m


def _generator_kernel(x_ref, w1_ref, b1_ref, w2_ref, b2_ref, w3_ref, b3_ref,
                      o_ref):
    # Layer 1: Linear + ReLU  (bf16 x bf16 on the MXU, f32 accumulation;
    # bias add / ReLU on the VPU in f32).
    h1 = jnp.dot(x_ref[...], w1_ref[...], preferred_element_type=jnp.float32)
    h1 = jnp.maximum(h1 + b1_ref[...], 0.0).astype(jnp.bfloat16)

    # Layer 2: Linear + ReLU
    h2 = jnp.dot(h1, w2_ref[...], preferred_element_type=jnp.float32)
    h2 = jnp.maximum(h2 + b2_ref[...], 0.0).astype(jnp.bfloat16)

    # Layer 3: Linear + Tanh (tanh runs on the EUP). Output stays f32.
    h3 = jnp.dot(h2, w3_ref[...], preferred_element_type=jnp.float32)
    o_ref[...] = jnp.tanh(h3 + b3_ref[...]).astype(o_ref.dtype)


def _choose_batch_tile(batch):
    # 256-row M tiles fill the v6e/v7x MXU (2x128 rows on v5e) and amortize
    # per-grid-step overhead.  For B > 256 this also guarantees >= 2 grid
    # steps so both v7x TensorCores get work via ("parallel",).
    if batch <= 256:
        return _round_up(batch, 8)
    return 256


@functools.partial(jax.jit, static_argnames=("batch_tile",))
def generator_forward(x, params, *, batch_tile=None):
    """x: (B, input_size) float32 -> (B, 2352) float32."""
    w1, b1, w2, b2, w3, b3 = params
    B, in_dim = x.shape

    if batch_tile is None:
        batch_tile = _choose_batch_tile(B)
    b_pad = _round_up(B, batch_tile)

    # Cast activations to bf16 (both MXU operands bf16); pad the batch to the
    # tile and pad w3/b3 lane dim 2352 -> 2432 with zeros (tanh(0)=0 in the
    # padded columns, sliced off below).
    x = x.astype(jnp.bfloat16)
    if b_pad != B:
        x = jnp.pad(x, ((0, b_pad - B), (0, 0)))
    w3p = jnp.pad(w3, ((0, 0), (0, OUT_PAD - OUT_DIM)))
    b3p = jnp.pad(b3, ((0, 0), (0, OUT_PAD - OUT_DIM)))

    grid = (b_pad // batch_tile,)

    # Weights / biases are fully resident in VMEM; their index_map is constant
    # across grid steps, so Pallas fetches each of them exactly once.
    def full(shape):
        return pl.BlockSpec(shape, lambda i: (0, 0))

    out = pl.pallas_call(
        _generator_kernel,
        out_shape=jax.ShapeDtypeStruct((b_pad, OUT_PAD), jnp.float32),
        grid_spec=pltpu.PrefetchScalarGridSpec(
            num_scalar_prefetch=0,
            grid=grid,
            in_specs=[
                pl.BlockSpec((batch_tile, in_dim), lambda i: (i, 0)),  # x
                full((in_dim, HIDDEN)),   # w1 (bf16)
                full((1, HIDDEN)),        # b1 (f32)
                full((HIDDEN, HIDDEN)),   # w2 (bf16)
                full((1, HIDDEN)),        # b2 (f32)
                full((HIDDEN, OUT_PAD)),  # w3 (bf16, lane-padded)
                full((1, OUT_PAD)),       # b3 (f32, lane-padded)
            ],
            out_specs=pl.BlockSpec((batch_tile, OUT_PAD), lambda i: (i, 0)),
        ),
        compiler_params=pltpu.CompilerParams(
            dimension_semantics=("parallel",)),
    )(x, w1, b1, w2, b2, w3p, b3p)

    return out[:B, :OUT_DIM]


def init_params(key, input_size):
    """PyTorch-style U(+-1/sqrt(fan_in)) init.

    Weights are stored as (in_features, out_features) — the transpose of
    nn.Linear's layout — in bfloat16 (native MXU dtype); biases stay float32.
    """
    def linear(key, fan_in, fan_out):
        kw, kb = jax.random.split(key)
        bound = 1.0 / jnp.sqrt(fan_in)
        w = jax.random.uniform(kw, (fan_in, fan_out), jnp.float32,
                               minval=-bound, maxval=bound).astype(jnp.bfloat16)
        b = jax.random.uniform(kb, (1, fan_out), jnp.float32,
                               minval=-bound, maxval=bound)
        return w, b

    k1, k2, k3 = jax.random.split(key, 3)
    w1, b1 = linear(k1, input_size, HIDDEN)
    w2, b2 = linear(k2, HIDDEN, HIDDEN)
    w3, b3 = linear(k3, HIDDEN, OUT_DIM)
    return (w1, b1, w2, b2, w3, b3)


def reference_forward(x, params):
    """f32 reference (same bf16-stored weights, f32 math)."""
    w1, b1, w2, b2, w3, b3 = params
    x = x.astype(jnp.float32)
    h1 = jnp.maximum(x @ w1.astype(jnp.float32) + b1, 0.0)
    h2 = jnp.maximum(h1 @ w2.astype(jnp.float32) + b2, 0.0)
    return jnp.tanh(h2 @ w3.astype(jnp.float32) + b3)


if __name__ == "__main__":
    input_size = 32
    batch = 8

    key = jax.random.PRNGKey(0)
    k_params, k_x = jax.random.split(key)

    params = init_params(k_params, input_size)
    x = jax.random.normal(k_x, (batch, input_size), jnp.float32)

    out = generator_forward(x, params)
    out = jax.block_until_ready(out)

    assert out.shape == (batch, OUT_DIM), out.shape
    assert out.dtype == jnp.float32, out.dtype

    ref = jax.block_until_ready(reference_forward(x, params))
    # bf16 activations/weights in the kernel vs f32 reference math.
    assert jnp.allclose(out, ref, atol=2e-2, rtol=0), (
        float(jnp.max(jnp.abs(out - ref))))

    print("KERNEL_OK")
</pallas_src>

<mosaic_0001>
module attributes {stable_mosaic.version = 11 : i64} {
  func.func @_generator_kernel(%arg0: i32, %arg1: memref<8x32xbf16, #tpu.memory_space<vmem>>, %arg2: memref<32x256xbf16, #tpu.memory_space<vmem>>, %arg3: memref<1x256xf32, #tpu.memory_space<vmem>>, %arg4: memref<256x256xbf16, #tpu.memory_space<vmem>>, %arg5: memref<1x256xf32, #tpu.memory_space<vmem>>, %arg6: memref<256x2432xbf16, #tpu.memory_space<vmem>>, %arg7: memref<1x2432xf32, #tpu.memory_space<vmem>>, %arg8: memref<8x2432xf32, #tpu.memory_space<vmem>>) attributes {dimension_semantics = [#tpu.dimension_semantics<parallel>], iteration_bounds = array<i64: 1>, scalar_prefetch = 0 : i64, scratch_operands = 0 : i64, tpu.core_type = #tpu.core_type<tc>, window_params = [{transform_indices = @transform_0, window_bounds = array<i64: 8, 32>}, {pipeline_mode = #tpu.pipeline_mode<synchronous>, transform_indices = @transform_1, window_bounds = array<i64: 32, 256>}, {pipeline_mode = #tpu.pipeline_mode<synchronous>, transform_indices = @transform_2, window_bounds = array<i64: 1, 256>}, {pipeline_mode = #tpu.pipeline_mode<synchronous>, transform_indices = @transform_3, window_bounds = array<i64: 256, 256>}, {pipeline_mode = #tpu.pipeline_mode<synchronous>, transform_indices = @transform_4, window_bounds = array<i64: 1, 256>}, {pipeline_mode = #tpu.pipeline_mode<synchronous>, transform_indices = @transform_5, window_bounds = array<i64: 256, 2432>}, {pipeline_mode = #tpu.pipeline_mode<synchronous>, transform_indices = @transform_6, window_bounds = array<i64: 1, 2432>}, {transform_indices = @transform_7, window_bounds = array<i64: 8, 2432>}]} {
    %c0 = arith.constant 0 : index
    %c0_0 = arith.constant 0 : index
    %0 = vector.load %arg1[%c0, %c0_0] : memref<8x32xbf16, #tpu.memory_space<vmem>>, vector<8x32xbf16>
    %c0_1 = arith.constant 0 : index
    %c0_2 = arith.constant 0 : index
    %1 = vector.load %arg2[%c0_1, %c0_2] : memref<32x256xbf16, #tpu.memory_space<vmem>>, vector<32x256xbf16>
    %cst = arith.constant dense<0.000000e+00> : vector<8x256xf32>
    %2 = tpu.matmul %0, %1, %cst {dimension_numbers = #tpu.dot_dimension_numbers<[1], [0], [0], [1], [0, 0, 1, 1], [], []>} : vector<8x32xbf16>, vector<32x256xbf16>, vector<8x256xf32> -> vector<8x256xf32>
    %c0_3 = arith.constant 0 : index
    %c0_4 = arith.constant 0 : index
    %3 = vector.load %arg3[%c0_3, %c0_4] : memref<1x256xf32, #tpu.memory_space<vmem>>, vector<1x256xf32>
    %4 = vector.broadcast %3 : vector<1x256xf32> to vector<8x256xf32>
    %5 = arith.addf %2, %4 : vector<8x256xf32>
    %cst_5 = arith.constant 0.000000e+00 : f32
    %6 = vector.broadcast %cst_5 : f32 to vector<8x256xf32>
    %7 = arith.maximumf %5, %6 : vector<8x256xf32>
    %8 = arith.truncf %7 : vector<8x256xf32> to vector<8x256xbf16>
    %c0_6 = arith.constant 0 : index
    %c0_7 = arith.constant 0 : index
    %9 = vector.load %arg4[%c0_6, %c0_7] : memref<256x256xbf16, #tpu.memory_space<vmem>>, vector<256x256xbf16>
    %cst_8 = arith.constant dense<0.000000e+00> : vector<8x256xf32>
    %10 = tpu.matmul %8, %9, %cst_8 {dimension_numbers = #tpu.dot_dimension_numbers<[1], [0], [0], [1], [0, 0, 1, 1], [], []>} : vector<8x256xbf16>, vector<256x256xbf16>, vector<8x256xf32> -> vector<8x256xf32>
    %c0_9 = arith.constant 0 : index
    %c0_10 = arith.constant 0 : index
    %11 = vector.load %arg5[%c0_9, %c0_10] : memref<1x256xf32, #tpu.memory_space<vmem>>, vector<1x256xf32>
    %12 = vector.broadcast %11 : vector<1x256xf32> to vector<8x256xf32>
    %13 = arith.addf %10, %12 : vector<8x256xf32>
    %cst_11 = arith.constant 0.000000e+00 : f32
    %14 = vector.broadcast %cst_11 : f32 to vector<8x256xf32>
    %15 = arith.maximumf %13, %14 : vector<8x256xf32>
    %16 = arith.truncf %15 : vector<8x256xf32> to vector<8x256xbf16>
    %c0_12 = arith.constant 0 : index
    %c0_13 = arith.constant 0 : index
    %17 = vector.load %arg6[%c0_12, %c0_13] : memref<256x2432xbf16, #tpu.memory_space<vmem>>, vector<256x2432xbf16>
    %cst_14 = arith.constant dense<0.000000e+00> : vector<8x2432xf32>
    %18 = tpu.matmul %16, %17, %cst_14 {dimension_numbers = #tpu.dot_dimension_numbers<[1], [0], [0], [1], [0, 0, 1, 1], [], []>} : vector<8x256xbf16>, vector<256x2432xbf16>, vector<8x2432xf32> -> vector<8x2432xf32>
    %c0_15 = arith.constant 0 : index
    %c0_16 = arith.constant 0 : index
    %19 = vector.load %arg7[%c0_15, %c0_16] : memref<1x2432xf32, #tpu.memory_space<vmem>>, vector<1x2432xf32>
    %20 = vector.broadcast %19 : vector<1x2432xf32> to vector<8x2432xf32>
    %21 = arith.addf %18, %20 : vector<8x2432xf32>
    %22 = math.tanh %21 : vector<8x2432xf32>
    %c0_17 = arith.constant 0 : index
    %c0_18 = arith.constant 0 : index
    %23 = vector.load %arg8[%c0_17, %c0_18] : memref<8x2432xf32, #tpu.memory_space<vmem>>, vector<8x2432xf32>
    tpu.vector_store %arg8[%c0_17, %c0_18], %22 {strides = array<i32>} : memref<8x2432xf32, #tpu.memory_space<vmem>>, vector<8x2432xf32>,
    return
  }
  func.func @transform_0(%arg0: i32) -> (i32, i32) {
    %c0_i32 = arith.constant 0 : i32
    %c0_i32_0 = arith.constant 0 : i32
    return %arg0, %c0_i32 : i32, i32
  }
  func.func @transform_1(%arg0: i32) -> (i32, i32) {
    %c0_i32 = arith.constant 0 : i32
    %c0_i32_0 = arith.constant 0 : i32
    %c0_i32_1 = arith.constant 0 : i32
    return %c0_i32, %c0_i32_0 : i32, i32
  }
  func.func @transform_2(%arg0: i32) -> (i32, i32) {
    %c0_i32 = arith.constant 0 : i32
    %c0_i32_0 = arith.constant 0 : i32
    %c0_i32_1 = arith.constant 0 : i32
    return %c0_i32, %c0_i32_0 : i32, i32
  }
  func.func @transform_3(%arg0: i32) -> (i32, i32) {
    %c0_i32 = arith.constant 0 : i32
    %c0_i32_0 = arith.constant 0 : i32
    %c0_i32_1 = arith.constant 0 : i32
    return %c0_i32, %c0_i32_0 : i32, i32
  }
  func.func @transform_4(%arg0: i32) -> (i32, i32) {
    %c0_i32 = arith.constant 0 : i32
    %c0_i32_0 = arith.constant 0 : i32
    %c0_i32_1 = arith.constant 0 : i32
    return %c0_i32, %c0_i32_0 : i32, i32
  }
  func.func @transform_5(%arg0: i32) -> (i32, i32) {
    %c0_i32 = arith.constant 0 : i32
    %c0_i32_0 = arith.constant 0 : i32
    %c0_i32_1 = arith.constant 0 : i32
    return %c0_i32, %c0_i32_0 : i32, i32
  }
  func.func @transform_6(%arg0: i32) -> (i32, i32) {
    %c0_i32 = arith.constant 0 : i32
    %c0_i32_0 = arith.constant 0 : i32
    %c0_i32_1 = arith.constant 0 : i32
    return %c0_i32, %c0_i32_0 : i32, i32
  }
  func.func @transform_7(%arg0: i32) -> (i32, i32) {
    %c0_i32 = arith.constant 0 : i32
    %c0_i32_0 = arith.constant 0 : i32
    return %arg0, %c0_i32 : i32, i32
  }
}

</mosaic_0001>

<llo_original>
// kernel: generator_forward.1
$region0: #{generator_forward.1}
  #allocation0 [shape = 'u32[]', space=smem, size = 0x4, offset = 0x4, fixed_abs, tag = 'smem constant byte address 0x4 - core index']
  #allocation1 [shape = 'u32[144,128]{1,0:T(1,128)}', space=vmem, size = 0x12000, scoped, tag = 'internal scratch']
  %s0 = inlined_call_operand.vmem [shape: bf16[8,32], index: 0, kind: input, shape index: {}]
  %s1 = inlined_call_operand.vmem [shape: bf16[32,256], index: 1, kind: input, shape index: {}]
  %s2 = inlined_call_operand.vmem [shape: f32[1,256], index: 2, kind: input, shape index: {}]
  %s3 = inlined_call_operand.vmem [shape: bf16[256,256], index: 3, kind: input, shape index: {}]
  %s4 = inlined_call_operand.vmem [shape: f32[1,256], index: 4, kind: input, shape index: {}]
  %s5 = inlined_call_operand.vmem [shape: bf16[256,2432], index: 5, kind: input, shape index: {}]
  %s6 = inlined_call_operand.vmem [shape: f32[1,2432], index: 6, kind: input, shape index: {}]
  %s7 = inlined_call_operand.hbm [shape: f32[8,2432], index: 7, kind: output, shape index: {}]
  %s8 = sld [smem:[#allocation0]]
  $region38: #{generator_forward.1} parent=0
    _
  %s10 = ssub.s32 1, %s8
  %s11 = scalar_select 0, %s10, %s8
  $region1: #{generator_forward.1} parent=0
    #allocation2 [shape = 'u8[77824]{0}', space=vmem, size = 0x13000, scoped, tag = 'output window, operand 0, single buffered']
    #allocation3 [shape = 's32[1]{0}', space=sflag, size = 0x4, scoped, tag = 'scoped memory for generator_forward.1']
    %12 = vsyncpa [#allocation3], 0
    // Predicated region
    $region2: #{generator_forward.1} parent=1 // pred_check
      _
    $region3: #{generator_forward.1} parent=1 // pred_check_branch
      %14 = sbr.rel (0) target = $region5
    $region4: #{generator_forward.1} parent=1 // pred_region
      _
    $region5: #{generator_forward.1} parent=1 // pred_fallthru
      _
    // Predicated region
    $region6: #{generator_forward.1} parent=1 // pred_check
      _
    $region7: #{generator_forward.1} parent=1 // pred_check_branch
      %16 = sbr.rel (0) target = $region9
    $region8: #{generator_forward.1} parent=1 // pred_region
      _
    $region9: #{generator_forward.1} parent=1 // pred_fallthru
      _
    // Predicated region
    $region10: #{generator_forward.1} parent=1 // pred_check
      _
    $region11: #{generator_forward.1} parent=1 // pred_check_branch
      %18 = sbr.rel (0) target = $region13
    $region12: #{generator_forward.1} parent=1 // pred_region
      _
    $region13: #{generator_forward.1} parent=1 // pred_fallthru
      _
    // Predicated region
    $region14: #{generator_forward.1} parent=1 // pred_check
      _
    $region15: #{generator_forward.1} parent=1 // pred_check_branch
      %20 = sbr.rel (0) target = $region17
    $region16: #{generator_forward.1} parent=1 // pred_region
      _
    $region17: #{generator_forward.1} parent=1 // pred_fallthru
      _
    // Predicated region
    $region18: #{generator_forward.1} parent=1 // pred_check
      _
    $region19: #{generator_forward.1} parent=1 // pred_check_branch
      %22 = sbr.rel (0) target = $region21
    $region20: #{generator_forward.1} parent=1 // pred_region
      _
    $region21: #{generator_forward.1} parent=1 // pred_fallthru
      _
    // Predicated region
    $region22: #{generator_forward.1} parent=1 // pred_check
      _
    $region23: #{generator_forward.1} parent=1 // pred_check_branch
      %24 = sbr.rel (0) target = $region25
    $region24: #{generator_forward.1} parent=1 // pred_region
      _
    $region25: #{generator_forward.1} parent=1 // pred_fallthru
      _
    // Predicated region
    $region26: #{generator_forward.1} parent=1 // pred_check
      _
    $region27: #{generator_forward.1} parent=1 // pred_check_branch
      %26 = sbr.rel (0) target = $region29
    $region28: #{generator_forward.1} parent=1 // pred_region
      _
    $region29: #{generator_forward.1} parent=1 // pred_fallthru
      _
    %v28 = vld [vmem:[%s0] sm:$0xf]
    %v29 = vld [vmem:[%s1] sm:$0xff]
    %v30 = vld [vmem:[%s1 + $0x8] sm:$0xff]
    %v31 = vld [vmem:[%s1 + $0x10] sm:$0xff]
    %v32 = vld [vmem:[%s1 + $0x18] sm:$0xff]
    %v33 = vld [vmem:[%s2] sm:$0x3]
    %v35 = vlaneseq
    %v36 = vshrl.u32 %v35, 7
    %v37 = vsub.s32 0, %v36
    %v38 = vrot.slane %v33, %v37
    %v39 = vlaneseq
    %v40 = vshrl.u32 %v39, 7
    %v41 = vsub.s32 1, %v40
    %v42 = vrot.slane %v33, %v41
    %v49 = vunpack.c.l.b16 %v29
    %v50 = vunpack.c.h.b16 %v29
    %v51 = vunpack.c.l.b16 %v30
    %v52 = vunpack.c.h.b16 %v30
    %v53 = vunpack.c.l.b16 %v31
    %v54 = vunpack.c.h.b16 %v31
    %v55 = vunpack.c.l.b16 %v32
    %v56 = vunpack.c.h.b16 %v32
    %v57 = vpack.c.b16 %v51, %v49
    %v58 = vpack.c.b16 %v52, %v50
    %v59 = vpack.c.b16 %v55, %v53
    %v60 = vpack.c.b16 %v56, %v54
    %vm65 = vcmask 261120
    %v67 = vsel %vm65, %v28, 0
    %69 = vmatprep.subr.bf16.mxu0 0
    %70 = vmatpush1.bf16.msra.mxu0 0
    %71 = vmatprep.subr.bf16.mxu0 0
    %72 = vmatpush1.bf16.msra.mxu0 0
    %73 = vmatprep.subr.bf16.mxu0 0
    %74 = vmatpush1.bf16.msra.mxu0 0
    %75 = vmatprep.subr.bf16.mxu0 0
    %76 = vmatpush1.bf16.msra.mxu0 0
    %77 = vmatprep.subr.bf16.mxu0 0
    %78 = vmatpush1.bf16.msra.mxu0 0
    %79 = vmatprep.subr.bf16.mxu0 0
    %80 = vmatpush1.bf16.msra.mxu0 0
    %81 = vmatprep.subr.bf16.mxu0 %v60
    %82 = vmatpush1.bf16.msra.mxu0 %v59
    %83 = vmatprep.subr.bf16.mxu0 %v58
    %84 = vmatpush1.bf16.msra.mxu0 %v57
    %85 = vmatprep.subr.bf16.mxu0 0
    %86 = vmatpush2.bf16.msra.mxu0 0
    %87 = vmatprep.subr.bf16.mxu0 0
    %88 = vmatpush2.bf16.msra.mxu0 0
    %89 = vmatprep.subr.bf16.mxu0 0
    %90 = vmatpush2.bf16.msra.mxu0 0
    %91 = vmatprep.subr.bf16.mxu0 0
    %92 = vmatpush2.bf16.msra.mxu0 0
    %93 = vmatprep.subr.bf16.mxu0 0
    %94 = vmatpush2.bf16.msra.mxu0 0
    %95 = vmatprep.subr.bf16.mxu0 0
    %96 = vmatpush2.bf16.msra.mxu0 0
    %97 = vmatprep.subr.bf16.mxu0 0
    %98 = vmatpush2.bf16.msra.mxu0 0
    %99 = vmatprep.subr.bf16.mxu0 0
    %100 = vmatpush2.bf16.msra.mxu0 0
    %101 = vmatprep.mubr.bf16.mxu0 0
    %102 = vmatmul.mubr.bf16.gmra.mxu0 %v67
    %v103 = vpop.f32.mrf.mxu0
    %v104 = vadd.f32 %v38, %v103
    %v105 = vpop.f32.mrf.mxu0
    %v106 = vadd.f32 %v42, %v105
    %v107 = vpop.f32.mrf.mxu0
    %v108 = vpop.f32.mrf.mxu0
    %109 = vdwg.mxu0
    %v110 = vmax.f32 %v104, 0.0
    %v111 = vmax.f32 %v106, 0.0
    %v112 = vpack.c.bf16 %v110, %v110
    %v113 = vpack.c.bf16 %v111, %v111
    %v114 = vld [vmem:[%s3] sm:$0xff]
    %v115 = vld [vmem:[%s3 + $0x8] sm:$0xff]
    %v116 = vld [vmem:[%s3 + $0x10] sm:$0xff]
    %v117 = vld [vmem:[%s3 + $0x18] sm:$0xff]
    %v118 = vld [vmem:[%s3 + $0x20] sm:$0xff]
    %v119 = vld [vmem:[%s3 + $0x28] sm:$0xff]
    %v120 = vld [vmem:[%s3 + $0x30] sm:$0xff]
    %v121 = vld [vmem:[%s3 + $0x38] sm:$0xff]
    %v122 = vld [vmem:[%s3 + $0x40] sm:$0xff]
    %v123 = vld [vmem:[%s3 + $0x48] sm:$0xff]
    %v124 = vld [vmem:[%s3 + $0x50] sm:$0xff]
    %v125 = vld [vmem:[%s3 + $0x58] sm:$0xff]
    %v126 = vld [vmem:[%s3 + $0x60] sm:$0xff]
    %v127 = vld [vmem:[%s3 + $0x68] sm:$0xff]
    %v128 = vld [vmem:[%s3 + $0x70] sm:$0xff]
    %v129 = vld [vmem:[%s3 + $0x78] sm:$0xff]
    %v130 = vld [vmem:[%s3 + $0x80] sm:$0xff]
    %v131 = vld [vmem:[%s3 + $0x88] sm:$0xff]
    %v132 = vld [vmem:[%s3 + $0x90] sm:$0xff]
    %v133 = vld [vmem:[%s3 + $0x98] sm:$0xff]
    %v134 = vld [vmem:[%s3 + $0xa0] sm:$0xff]
    %v135 = vld [vmem:[%s3 + $0xa8] sm:$0xff]
    %v136 = vld [vmem:[%s3 + $0xb0] sm:$0xff]
    %v137 = vld [vmem:[%s3 + $0xb8] sm:$0xff]
    %v138 = vld [vmem:[%s3 + $0xc0] sm:$0xff]
    %v139 = vld [vmem:[%s3 + $0xc8] sm:$0xff]
    %v140 = vld [vmem:[%s3 + $0xd0] sm:$0xff]
    %v141 = vld [vmem:[%s3 + $0xd8] sm:$0xff]
    %v142 = vld [vmem:[%s3 + $0xe0] sm:$0xff]
    %v143 = vld [vmem:[%s3 + $0xe8] sm:$0xff]
    %v144 = vld [vmem:[%s3 + $0xf0] sm:$0xff]
    %v145 = vld [vmem:[%s3 + $0xf8] sm:$0xff]
    %v146 = vld [vmem:[%s4] sm:$0x3]
    %v148 = vlaneseq
    %v149 = vshrl.u32 %v148, 7
    %v150 = vsub.s32 0, %v149
    %v151 = vrot.slane %v146, %v150
    %v152 = vlaneseq
    %v153 = vshrl.u32 %v152, 7
    %v154 = vsub.s32 1, %v153
    %v155 = vrot.slane %v146, %v154
    %v190 = vunpack.c.l.b16 %v114
    %v191 = vunpack.c.h.b16 %v114
    %v192 = vunpack.c.l.b16 %v115
    %v193 = vunpack.c.h.b16 %v115
    %v194 = vunpack.c.l.b16 %v116
    %v195 = vunpack.c.h.b16 %v116
    %v196 = vunpack.c.l.b16 %v117
    %v197 = vunpack.c.h.b16 %v117
    %v198 = vunpack.c.l.b16 %v118
    %v199 = vunpack.c.h.b16 %v118
    %v200 = vunpack.c.l.b16 %v119
    %v201 = vunpack.c.h.b16 %v119
    %v202 = vunpack.c.l.b16 %v120
    %v203 = vunpack.c.h.b16 %v120
    %v204 = vunpack.c.l.b16 %v121
    %v205 = vunpack.c.h.b16 %v121
    %v206 = vunpack.c.l.b16 %v122
    %v207 = vunpack.c.h.b16 %v122
    %v208 = vunpack.c.l.b16 %v123
    %v209 = vunpack.c.h.b16 %v123
    %v210 = vunpack.c.l.b16 %v124
    %v211 = vunpack.c.h.b16 %v124
    %v212 = vunpack.c.l.b16 %v125
    %v213 = vunpack.c.h.b16 %v125
    %v214 = vunpack.c.l.b16 %v126
    %v215 = vunpack.c.h.b16 %v126
    %v216 = vunpack.c.l.b16 %v127
    %v217 = vunpack.c.h.b16 %v127
    %v218 = vunpack.c.l.b16 %v128
    %v219 = vunpack.c.h.b16 %v128
    %v220 = vunpack.c.l.b16 %v129
    %v221 = vunpack.c.h.b16 %v129
    %v222 = vunpack.c.l.b16 %v130
    %v223 = vunpack.c.h.b16 %v130
    %v224 = vunpack.c.l.b16 %v131
    %v225 = vunpack.c.h.b16 %v131
    %v226 = vunpack.c.l.b16 %v132
    %v227 = vunpack.c.h.b16 %v132
    %v228 = vunpack.c.l.b16 %v133
    %v229 = vunpack.c.h.b16 %v133
    %v230 = vunpack.c.l.b16 %v134
    %v231 = vunpack.c.h.b16 %v134
    %v232 = vunpack.c.l.b16 %v135
    %v233 = vunpack.c.h.b16 %v135
    %v234 = vunpack.c.l.b16 %v136
    %v235 = vunpack.c.h.b16 %v136
    %v236 = vunpack.c.l.b16 %v137
    %v237 = vunpack.c.h.b16 %v137
    %v238 = vunpack.c.l.b16 %v138
    %v239 = vunpack.c.h.b16 %v138
    %v240 = vunpack.c.l.b16 %v139
    %v241 = vunpack.c.h.b16 %v139
    %v242 = vunpack.c.l.b16 %v140
    %v243 = vunpack.c.h.b16 %v140
    %v244 = vunpack.c.l.b16 %v141
    %v245 = vunpack.c.h.b16 %v141
    %v246 = vunpack.c.l.b16 %v142
    %v247 = vunpack.c.h.b16 %v142
    %v248 = vunpack.c.l.b16 %v143
    %v249 = vunpack.c.h.b16 %v143
    %v250 = vunpack.c.l.b16 %v144
    %v251 = vunpack.c.h.b16 %v144
    %v252 = vunpack.c.l.b16 %v145
    %v253 = vunpack.c.h.b16 %v145
    %v254 = vpack.c.b16 %v192, %v190
    %v255 = vpack.c.b16 %v193, %v191
    %v256 = vpack.c.b16 %v196, %v194
    %v257 = vpack.c.b16 %v197, %v195
    %v258 = vpack.c.b16 %v200, %v198
    %v259 = vpack.c.b16 %v201, %v199
    %v260 = vpack.c.b16 %v204, %v202
    %v261 = vpack.c.b16 %v205, %v203
    %v262 = vpack.c.b16 %v208, %v206
    %v263 = vpack.c.b16 %v209, %v207
    %v264 = vpack.c.b16 %v212, %v210
    %v265 = vpack.c.b16 %v213, %v211
    %v266 = vpack.c.b16 %v216, %v214
    %v267 = vpack.c.b16 %v217, %v215
    %v268 = vpack.c.b16 %v220, %v218
    %v269 = vpack.c.b16 %v221, %v219
    %v270 = vpack.c.b16 %v224, %v222
    %v271 = vpack.c.b16 %v225, %v223
    %v272 = vpack.c.b16 %v228, %v226
    %v273 = vpack.c.b16 %v229, %v227
    %v274 = vpack.c.b16 %v232, %v230
    %v275 = vpack.c.b16 %v233, %v231
    %v276 = vpack.c.b16 %v236, %v234
    %v277 = vpack.c.b16 %v237, %v235
    %v278 = vpack.c.b16 %v240, %v238
    %v279 = vpack.c.b16 %v241, %v239
    %v280 = vpack.c.b16 %v244, %v242
    %v281 = vpack.c.b16 %v245, %v243
    %v282 = vpack.c.b16 %v248, %v246
    %v283 = vpack.c.b16 %v249, %v247
    %v284 = vpack.c.b16 %v252, %v250
    %v285 = vpack.c.b16 %v253, %v251
    %318 = vmatprep.subr.bf16.mxu0 %v269
    %319 = vmatpush1.bf16.msra.mxu0 %v268
    %320 = vmatprep.subr.bf16.mxu0 %v267
    %321 = vmatpush1.bf16.msra.mxu0 %v266
    %322 = vmatprep.subr.bf16.mxu0 %v265
    %323 = vmatpush1.bf16.msra.mxu0 %v264
    %324 = vmatprep.subr.bf16.mxu0 %v263
    %325 = vmatpush1.bf16.msra.mxu0 %v262
    %326 = vmatprep.subr.bf16.mxu0 %v261
    %327 = vmatpush1.bf16.msra.mxu0 %v260
    %328 = vmatprep.subr.bf16.mxu0 %v259
    %329 = vmatpush1.bf16.msra.mxu0 %v258
    %330 = vmatprep.subr.bf16.mxu0 %v257
    %331 = vmatpush1.bf16.msra.mxu0 %v256
    %332 = vmatprep.subr.bf16.mxu0 %v255
    %333 = vmatpush1.bf16.msra.mxu0 %v254
    %334 = vmatprep.subr.bf16.mxu0 %v285
    %335 = vmatpush2.bf16.msra.mxu0 %v284
    %336 = vmatprep.subr.bf16.mxu0 %v283
    %337 = vmatpush2.bf16.msra.mxu0 %v282
    %338 = vmatprep.subr.bf16.mxu0 %v281
    %339 = vmatpush2.bf16.msra.mxu0 %v280
    %340 = vmatprep.subr.bf16.mxu0 %v279
    %341 = vmatpush2.bf16.msra.mxu0 %v278
    %342 = vmatprep.subr.bf16.mxu0 %v277
    %343 = vmatpush2.bf16.msra.mxu0 %v276
    %344 = vmatprep.subr.bf16.mxu0 %v275
    %345 = vmatpush2.bf16.msra.mxu0 %v274
    %346 = vmatprep.subr.bf16.mxu0 %v273
    %347 = vmatpush2.bf16.msra.mxu0 %v272
    %348 = vmatprep.subr.bf16.mxu0 %v271
    %349 = vmatpush2.bf16.msra.mxu0 %v270
    %350 = vmatprep.mubr.bf16.mxu0 %v113
    %351 = vmatmul.mubr.bf16.gmra.mxu0 %v112
    %v352 = vpop.f32.mrf.mxu0
    %v353 = vadd.f32 %v151, %v352
    %v354 = vpop.f32.mrf.mxu0
    %v355 = vadd.f32 %v155, %v354
    %v356 = vpop.f32.mrf.mxu0
    %v357 = vpop.f32.mrf.mxu0
    %358 = vdwg.mxu0
    %v359 = vmax.f32 %v353, 0.0
    %v360 = vmax.f32 %v355, 0.0
    %v361 = vpack.c.bf16 %v359, %v359
    %v362 = vpack.c.bf16 %v360, %v360
    %v363 = vld [vmem:[%s5] sm:$0xff]
    %v364 = vld [vmem:[%s5 + $0x8] sm:$0xff]
    %v365 = vld [vmem:[%s5 + $0x10] sm:$0xff]
    %v366 = vld [vmem:[%s5 + $0x18] sm:$0xff]
    %v367 = vld [vmem:[%s5 + $0x20] sm:$0xff]
    %v368 = vld [vmem:[%s5 + $0x28] sm:$0xff]
    %v369 = vld [vmem:[%s5 + $0x30] sm:$0xff]
    %v370 = vld [vmem:[%s5 + $0x38] sm:$0xff]
    %v371 = vld [vmem:[%s5 + $0x40] sm:$0xff]
    %v372 = vld [vmem:[%s5 + $0x48] sm:$0xf]
    %v373 = vld [vmem:[%s5 + $0x4c] sm:$0xff]
    %v374 = vld [vmem:[%s5 + $0x54] sm:$0xff]
    %v375 = vld [vmem:[%s5 + $0x5c] sm:$0xff]
    %v376 = vld [vmem:[%s5 + $0x64] sm:$0xff]
    %v377 = vld [vmem:[%s5 + $0x6c] sm:$0xff]
    %v378 = vld [vmem:[%s5 + $0x74] sm:$0xff]
    %v379 = vld [vmem:[%s5 + $0x7c] sm:$0xff]
    %v380 = vld [vmem:[%s5 + $0x84] sm:$0xff]
    %v381 = vld [vmem:[%s5 + $0x8c] sm:$0xff]
    %v382 = vld [vmem:[%s5 + $0x94] sm:$0xf]
    %v383 = vld [vmem:[%s5 + $0x98] sm:$0xff]
    %v384 = vld [vmem:[%s5 + $0xa0] sm:$0xff]
    %v385 = vld [vmem:[%s5 + $0xa8] sm:$0xff]
    %v386 = vld [vmem:[%s5 + $0xb0] sm:$0xff]
    %v387 = vld [vmem:[%s5 + $0xb8] sm:$0xff]
    %v388 = vld [vmem:[%s5 + $0xc0] sm:$0xff]
    %v389 = vld [vmem:[%s5 + $0xc8] sm:$0xff]
    %v390 = vld [vmem:[%s5 + $0xd0] sm:$0xff]
    %v391 = vld [vmem:[%s5 + $0xd8] sm:$0xff]
    %v392 = vld [vmem:[%s5 + $0xe0] sm:$0xf]
    %v393 = vld [vmem:[%s5 + $0xe4] sm:$0xff]
    %v394 = vld [vmem:[%s5 + $0xec] sm:$0xff]
    %v395 = vld [vmem:[%s5 + $0xf4] sm:$0xff]
    %v396 = vld [vmem:[%s5 + $0xfc] sm:$0xff]
    %v397 = vld [vmem:[%s5 + $0x104] sm:$0xff]
    %v398 = vld [vmem:[%s5 + $0x10c] sm:$0xff]
    %v399 = vld [vmem:[%s5 + $0x114] sm:$0xff]
    %v400 = vld [vmem:[%s5 + $0x11c] sm:$0xff]
    %v401 = vld [vmem:[%s5 + $0x124] sm:$0xff]
    %v402 = vld [vmem:[%s5 + $0x12c] sm:$0xf]
    %v403 = vld [vmem:[%s5 + $0x130] sm:$0xff]
    %v404 = vld [vmem:[%s5 + $0x138] sm:$0xff]
    %v405 = vld [vmem:[%s5 + $0x140] sm:$0xff]
    %v406 = vld [vmem:[%s5 + $0x148] sm:$0xff]
    %v407 = vld [vmem:[%s5 + $0x150] sm:$0xff]
    %v408 = vld [vmem:[%s5 + $0x158] sm:$0xff]
    %v409 = vld [vmem:[%s5 + $0x160] sm:$0xff]
    %v410 = vld [vmem:[%s5 + $0x168] sm:$0xff]
    %v411 = vld [vmem:[%s5 + $0x170] sm:$0xff]
    %v412 = vld [vmem:[%s5 + $0x178] sm:$0xf]
    %v413 = vld [vmem:[%s5 + $0x17c] sm:$0xff]
    %v414 = vld [vmem:[%s5 + $0x184] sm:$0xff]
    %v415 = vld [vmem:[%s5 + $0x18c] sm:$0xff]
    %v416 = vld [vmem:[%s5 + $0x194] sm:$0xff]
    %v417 = vld [vmem:[%s5 + $0x19c] sm:$0xff]
    %v418 = vld [vmem:[%s5 + $0x1a4] sm:$0xff]
    %v419 = vld [vmem:[%s5 + $0x1ac] sm:$0xff]
    %v420 = vld [vmem:[%s5 + $0x1b4] sm:$0xff]
    %v421 = vld [vmem:[%s5 + $0x1bc] sm:$0xff]
    %v422 = vld [vmem:[%s5 + $0x1c4] sm:$0xf]
    %v423 = vld [vmem:[%s5 + $0x1c8] sm:$0xff]
    %v424 = vld [vmem:[%s5 + $0x1d0] sm:$0xff]
    %v425 = vld [vmem:[%s5 + $0x1d8] sm:$0xff]
    %v426 = vld [vmem:[%s5 + $0x1e0] sm:$0xff]
    %v427 = vld [vmem:[%s5 + $0x1e8] sm:$0xff]
    %v428 = vld [vmem:[%s5 + $0x1f0] sm:$0xff]
    %v429 = vld [vmem:[%s5 + $0x1f8] sm:$0xff]
    %v430 = vld [vmem:[%s5 + $0x200] sm:$0xff]
    %v431 = vld [vmem:[%s5 + $0x208] sm:$0xff]
    %v432 = vld [vmem:[%s5 + $0x210] sm:$0xf]
    %v433 = vld [vmem:[%s5 + $0x214] sm:$0xff]
    %v434 = vld [vmem:[%s5 + $0x21c] sm:$0xff]
    %v435 = vld [vmem:[%s5 + $0x224] sm:$0xff]
    %v436 = vld [vmem:[%s5 + $0x22c] sm:$0xff]
    %v437 = vld [vmem:[%s5 + $0x234] sm:$0xff]
    %v438 = vld [vmem:[%s5 + $0x23c] sm:$0xff]
    %v439 = vld [vmem:[%s5 + $0x244] sm:$0xff]
    %v440 = vld [vmem:[%s5 + $0x24c] sm:$0xff]
    %v441 = vld [vmem:[%s5 + $0x254] sm:$0xff]
    %v442 = vld [vmem:[%s5 + $0x25c] sm:$0xf]
    %v443 = vld [vmem:[%s5 + $0x260] sm:$0xff]
    %v444 = vld [vmem:[%s5 + $0x268] sm:$0xff]
    %v445 = vld [vmem:[%s5 + $0x270] sm:$0xff]
    %v446 = vld [vmem:[%s5 + $0x278] sm:$0xff]
    %v447 = vld [vmem:[%s5 + $0x280] sm:$0xff]
    %v448 = vld [vmem:[%s5 + $0x288] sm:$0xff]
    %v449 = vld [vmem:[%s5 + $0x290] sm:$0xff]
    %v450 = vld [vmem:[%s5 + $0x298] sm:$0xff]
    %v451 = vld [vmem:[%s5 + $0x2a0] sm:$0xff]
    %v452 = vld [vmem:[%s5 + $0x2a8] sm:$0xf]
    %v453 = vld [vmem:[%s5 + $0x2ac] sm:$0xff]
    %v454 = vld [vmem:[%s5 + $0x2b4] sm:$0xff]
    %v455 = vld [vmem:[%s5 + $0x2bc] sm:$0xff]
    %v456 = vld [vmem:[%s5 + $0x2c4] sm:$0xff]
    %v457 = vld [vmem:[%s5 + $0x2cc] sm:$0xff]
    %v458 = vld [vmem:[%s5 + $0x2d4] sm:$0xff]
    %v459 = vld [vmem:[%s5 + $0x2dc] sm:$0xff]
    %v460 = vld [vmem:[%s5 + $0x2e4] sm:$0xff]
    %v461 = vld [vmem:[%s5 + $0x2ec] sm:$0xff]
    %v462 = vld [vmem:[%s5 + $0x2f4] sm:$0xf]
    %v463 = vld [vmem:[%s5 + $0x2f8] sm:$0xff]
    %v464 = vld [vmem:[%s5 + $0x300] sm:$0xff]
    %v465 = vld [vmem:[%s5 + $0x308] sm:$0xff]
    %v466 = vld [vmem:[%s5 + $0x310] sm:$0xff]
    %v467 = vld [vmem:[%s5 + $0x318] sm:$0xff]
    %v468 = vld [vmem:[%s5 + $0x320] sm:$0xff]
    %v469 = vld [vmem:[%s5 + $0x328] sm:$0xff]
    %v470 = vld [vmem:[%s5 + $0x330] sm:$0xff]
    %v471 = vld [vmem:[%s5 + $0x338] sm:$0xff]
    %v472 = vld [vmem:[%s5 + $0x340] sm:$0xf]
    %v473 = vld [vmem:[%s5 + $0x344] sm:$0xff]
    %v474 = vld [vmem:[%s5 + $0x34c] sm:$0xff]
    %v475 = vld [vmem:[%s5 + $0x354] sm:$0xff]
    %v476 = vld [vmem:[%s5 + $0x35c] sm:$0xff]
    %v477 = vld [vmem:[%s5 + $0x364] sm:$0xff]
    %v478 = vld [vmem:[%s5 + $0x36c] sm:$0xff]
    %v479 = vld [vmem:[%s5 + $0x374] sm:$0xff]
    %v480 = vld [vmem:[%s5 + $0x37c] sm:$0xff]
    %v481 = vld [vmem:[%s5 + $0x384] sm:$0xff]
    %v482 = vld [vmem:[%s5 + $0x38c] sm:$0xf]
    %v483 = vld [vmem:[%s5 + $0x390] sm:$0xff]
    %v484 = vld [vmem:[%s5 + $0x398] sm:$0xff]
    %v485 = vld [vmem:[%s5 + $0x3a0] sm:$0xff]
    %v486 = vld [vmem:[%s5 + $0x3a8] sm:$0xff]
    %v487 = vld [vmem:[%s5 + $0x3b0] sm:$0xff]
    %v488 = vld [vmem:[%s5 + $0x3b8] sm:$0xff]
    %v489 = vld [vmem:[%s5 + $0x3c0] sm:$0xff]
    %v490 = vld [vmem:[%s5 + $0x3c8] sm:$0xff]
    %v491 = vld [vmem:[%s5 + $0x3d0] sm:$0xff]
    %v492 = vld [vmem:[%s5 + $0x3d8] sm:$0xf]
    %v493 = vld [vmem:[%s5 + $0x3dc] sm:$0xff]
    %v494 = vld [vmem:[%s5 + $0x3e4] sm:$0xff]
    %v495 = vld [vmem:[%s5 + $0x3ec] sm:$0xff]
    %v496 = vld [vmem:[%s5 + $0x3f4] sm:$0xff]
    %v497 = vld [vmem:[%s5 + $0x3fc] sm:$0xff]
    %v498 = vld [vmem:[%s5 + $0x404] sm:$0xff]
    %v499 = vld [vmem:[%s5 + $0x40c] sm:$0xff]
    %v500 = vld [vmem:[%s5 + $0x414] sm:$0xff]
    %v501 = vld [vmem:[%s5 + $0x41c] sm:$0xff]
    %v502 = vld [vmem:[%s5 + $0x424] sm:$0xf]
    %v503 = vld [vmem:[%s5 + $0x428] sm:$0xff]
    %v504 = vld [vmem:[%s5 + $0x430] sm:$0xff]
    %v505 = vld [vmem:[%s5 + $0x438] sm:$0xff]
    %v506 = vld [vmem:[%s5 + $0x440] sm:$0xff]
    %v507 = vld [vmem:[%s5 + $0x448] sm:$0xff]
    %v508 = vld [vmem:[%s5 + $0x450] sm:$0xff]
    %v509 = vld [vmem:[%s5 + $0x458] sm:$0xff]
    %v510 = vld [vmem:[%s5 + $0x460] sm:$0xff]
    %v511 = vld [vmem:[%s5 + $0x468] sm:$0xff]
    %v512 = vld [vmem:[%s5 + $0x470] sm:$0xf]
    %v513 = vld [vmem:[%s5 + $0x474] sm:$0xff]
    %v514 = vld [vmem:[%s5 + $0x47c] sm:$0xff]
    %v515 = vld [vmem:[%s5 + $0x484] sm:$0xff]
    %v516 = vld [vmem:[%s5 + $0x48c] sm:$0xff]
    %v517 = vld [vmem:[%s5 + $0x494] sm:$0xff]
    %v518 = vld [vmem:[%s5 + $0x49c] sm:$0xff]
    %v519 = vld [vmem:[%s5 + $0x4a4] sm:$0xff]
    %v520 = vld [vmem:[%s5 + $0x4ac] sm:$0xff]
    %v521 = vld [vmem:[%s5 + $0x4b4] sm:$0xff]
    %v522 = vld [vmem:[%s5 + $0x4bc] sm:$0xf]
    %v523 = vld [vmem:[%s5 + $0x4c0] sm:$0xff]
    %v524 = vld [vmem:[%s5 + $0x4c8] sm:$0xff]
    %v525 = vld [vmem:[%s5 + $0x4d0] sm:$0xff]
    %v526 = vld [vmem:[%s5 + $0x4d8] sm:$0xff]
    %v527 = vld [vmem:[%s5 + $0x4e0] sm:$0xff]
    %v528 = vld [vmem:[%s5 + $0x4e8] sm:$0xff]
    %v529 = vld [vmem:[%s5 + $0x4f0] sm:$0xff]
    %v530 = vld [vmem:[%s5 + $0x4f8] sm:$0xff]
    %v531 = vld [vmem:[%s5 + $0x500] sm:$0xff]
    %v532 = vld [vmem:[%s5 + $0x508] sm:$0xf]
    %v533 = vld [vmem:[%s5 + $0x50c] sm:$0xff]
    %v534 = vld [vmem:[%s5 + $0x514] sm:$0xff]
    %v535 = vld [vmem:[%s5 + $0x51c] sm:$0xff]
    %v536 = vld [vmem:[%s5 + $0x524] sm:$0xff]
    %v537 = vld [vmem:[%s5 + $0x52c] sm:$0xff]
    %v538 = vld [vmem:[%s5 + $0x534] sm:$0xff]
    %v539 = vld [vmem:[%s5 + $0x53c] sm:$0xff]
    %v540 = vld [vmem:[%s5 + $0x544] sm:$0xff]
    %v541 = vld [vmem:[%s5 + $0x54c] sm:$0xff]
    %v542 = vld [vmem:[%s5 + $0x554] sm:$0xf]
    %v543 = vld [vmem:[%s5 + $0x558] sm:$0xff]
    %v544 = vld [vmem:[%s5 + $0x560] sm:$0xff]
    %v545 = vld [vmem:[%s5 + $0x568] sm:$0xff]
    %v546 = vld [vmem:[%s5 + $0x570] sm:$0xff]
    %v547 = vld [vmem:[%s5 + $0x578] sm:$0xff]
    %v548 = vld [vmem:[%s5 + $0x580] sm:$0xff]
    %v549 = vld [vmem:[%s5 + $0x588] sm:$0xff]
    %v550 = vld [vmem:[%s5 + $0x590] sm:$0xff]
    %v551 = vld [vmem:[%s5 + $0x598] sm:$0xff]
    %v552 = vld [vmem:[%s5 + $0x5a0] sm:$0xf]
    %v553 = vld [vmem:[%s5 + $0x5a4] sm:$0xff]
    %v554 = vld [vmem:[%s5 + $0x5ac] sm:$0xff]
    %v555 = vld [vmem:[%s5 + $0x5b4] sm:$0xff]
    %v556 = vld [vmem:[%s5 + $0x5bc] sm:$0xff]
    %v557 = vld [vmem:[%s5 + $0x5c4] sm:$0xff]
    %v558 = vld [vmem:[%s5 + $0x5cc] sm:$0xff]
    %v559 = vld [vmem:[%s5 + $0x5d4] sm:$0xff]
    %v560 = vld [vmem:[%s5 + $0x5dc] sm:$0xff]
    %v561 = vld [vmem:[%s5 + $0x5e4] sm:$0xff]
    %v562 = vld [vmem:[%s5 + $0x5ec] sm:$0xf]
    %v563 = vld [vmem:[%s5 + $0x5f0] sm:$0xff]
    %v564 = vld [vmem:[%s5 + $0x5f8] sm:$0xff]
    %v565 = vld [vmem:[%s5 + $0x600] sm:$0xff]
    %v566 = vld [vmem:[%s5 + $0x608] sm:$0xff]
    %v567 = vld [vmem:[%s5 + $0x610] sm:$0xff]
    %v568 = vld [vmem:[%s5 + $0x618] sm:$0xff]
    %v569 = vld [vmem:[%s5 + $0x620] sm:$0xff]
    %v570 = vld [vmem:[%s5 + $0x628] sm:$0xff]
    %v571 = vld [vmem:[%s5 + $0x630] sm:$0xff]
    %v572 = vld [vmem:[%s5 + $0x638] sm:$0xf]
    %v573 = vld [vmem:[%s5 + $0x63c] sm:$0xff]
    %v574 = vld [vmem:[%s5 + $0x644] sm:$0xff]
    %v575 = vld [vmem:[%s5 + $0x64c] sm:$0xff]
    %v576 = vld [vmem:[%s5 + $0x654] sm:$0xff]
    %v577 = vld [vmem:[%s5 + $0x65c] sm:$0xff]
    %v578 = vld [vmem:[%s5 + $0x664] sm:$0xff]
    %v579 = vld [vmem:[%s5 + $0x66c] sm:$0xff]
    %v580 = vld [vmem:[%s5 + $0x674] sm:$0xff]
    %v581 = vld [vmem:[%s5 + $0x67c] sm:$0xff]
    %v582 = vld [vmem:[%s5 + $0x684] sm:$0xf]
    %v583 = vld [vmem:[%s5 + $0x688] sm:$0xff]
    %v584 = vld [vmem:[%s5 + $0x690] sm:$0xff]
    %v585 = vld [vmem:[%s5 + $0x698] sm:$0xff]
    %v586 = vld [vmem:[%s5 + $0x6a0] sm:$0xff]
    %v587 = vld [vmem:[%s5 + $0x6a8] sm:$0xff]
    %v588 = vld [vmem:[%s5 + $0x6b0] sm:$0xff]
    %v589 = vld [vmem:[%s5 + $0x6b8] sm:$0xff]
    %v590 = vld [vmem:[%s5 + $0x6c0] sm:$0xff]
    %v591 = vld [vmem:[%s5 + $0x6c8] sm:$0xff]
    %v592 = vld [vmem:[%s5 + $0x6d0] sm:$0xf]
    %v593 = vld [vmem:[%s5 + $0x6d4] sm:$0xff]
    %v594 = vld [vmem:[%s5 + $0x6dc] sm:$0xff]
    %v595 = vld [vmem:[%s5 + $0x6e4] sm:$0xff]
    %v596 = vld [vmem:[%s5 + $0x6ec] sm:$0xff]
    %v597 = vld [vmem:[%s5 + $0x6f4] sm:$0xff]
    %v598 = vld [vmem:[%s5 + $0x6fc] sm:$0xff]
    %v599 = vld [vmem:[%s5 + $0x704] sm:$0xff]
    %v600 = vld [vmem:[%s5 + $0x70c] sm:$0xff]
    %v601 = vld [vmem:[%s5 + $0x714] sm:$0xff]
    %v602 = vld [vmem:[%s5 + $0x71c] sm:$0xf]
    %v603 = vld [vmem:[%s5 + $0x720] sm:$0xff]
    %v604 = vld [vmem:[%s5 + $0x728] sm:$0xff]
    %v605 = vld [vmem:[%s5 + $0x730] sm:$0xff]
    %v606 = vld [vmem:[%s5 + $0x738] sm:$0xff]
    %v607 = vld [vmem:[%s5 + $0x740] sm:$0xff]
    %v608 = vld [vmem:[%s5 + $0x748] sm:$0xff]
    %v609 = vld [vmem:[%s5 + $0x750] sm:$0xff]
    %v610 = vld [vmem:[%s5 + $0x758] sm:$0xff]
    %v611 = vld [vmem:[%s5 + $0x760] sm:$0xff]
    %v612 = vld [vmem:[%s5 + $0x768] sm:$0xf]
    %v613 = vld [vmem:[%s5 + $0x76c] sm:$0xff]
    %v614 = vld [vmem:[%s5 + $0x774] sm:$0xff]
    %v615 = vld [vmem:[%s5 + $0x77c] sm:$0xff]
    %v616 = vld [vmem:[%s5 + $0x784] sm:$0xff]
    %v617 = vld [vmem:[%s5 + $0x78c] sm:$0xff]
    %v618 = vld [vmem:[%s5 + $0x794] sm:$0xff]
    %v619 = vld [vmem:[%s5 + $0x79c] sm:$0xff]
    %v620 = vld [vmem:[%s5 + $0x7a4] sm:$0xff]
    %v621 = vld [vmem:[%s5 + $0x7ac] sm:$0xff]
    %v622 = vld [vmem:[%s5 + $0x7b4] sm:$0xf]
    %v623 = vld [vmem:[%s5 + $0x7b8] sm:$0xff]
    %v624 = vld [vmem:[%s5 + $0x7c0] sm:$0xff]
    %v625 = vld [vmem:[%s5 + $0x7c8] sm:$0xff]
    %v626 = vld [vmem:[%s5 + $0x7d0] sm:$0xff]
    %v627 = vld [vmem:[%s5 + $0x7d8] sm:$0xff]
    %v628 = vld [vmem:[%s5 + $0x7e0] sm:$0xff]
    %v629 = vld [vmem:[%s5 + $0x7e8] sm:$0xff]
    %v630 = vld [vmem:[%s5 + $0x7f0] sm:$0xff]
    %v631 = vld [vmem:[%s5 + $0x7f8] sm:$0xff]
    %v632 = vld [vmem:[%s5 + $0x800] sm:$0xf]
    %v633 = vld [vmem:[%s5 + $0x804] sm:$0xff]
    %v634 = vld [vmem:[%s5 + $0x80c] sm:$0xff]
    %v635 = vld [vmem:[%s5 + $0x814] sm:$0xff]
    %v636 = vld [vmem:[%s5 + $0x81c] sm:$0xff]
    %v637 = vld [vmem:[%s5 + $0x824] sm:$0xff]
    %v638 = vld [vmem:[%s5 + $0x82c] sm:$0xff]
    %v639 = vld [vmem:[%s5 + $0x834] sm:$0xff]
    %v640 = vld [vmem:[%s5 + $0x83c] sm:$0xff]
    %v641 = vld [vmem:[%s5 + $0x844] sm:$0xff]
    %v642 = vld [vmem:[%s5 + $0x84c] sm:$0xf]
    %v643 = vld [vmem:[%s5 + $0x850] sm:$0xff]
    %v644 = vld [vmem:[%s5 + $0x858] sm:$0xff]
    %v645 = vld [vmem:[%s5 + $0x860] sm:$0xff]
    %v646 = vld [vmem:[%s5 + $0x868] sm:$0xff]
    %v647 = vld [vmem:[%s5 + $0x870] sm:$0xff]
    %v648 = vld [vmem:[%s5 + $0x878] sm:$0xff]
    %v649 = vld [vmem:[%s5 + $0x880] sm:$0xff]
    %v650 = vld [vmem:[%s5 + $0x888] sm:$0xff]
    %v651 = vld [vmem:[%s5 + $0x890] sm:$0xff]
    %v652 = vld [vmem:[%s5 + $0x898] sm:$0xf]
    %v653 = vld [vmem:[%s5 + $0x89c] sm:$0xff]
    %v654 = vld [vmem:[%s5 + $0x8a4] sm:$0xff]
    %v655 = vld [vmem:[%s5 + $0x8ac] sm:$0xff]
    %v656 = vld [vmem:[%s5 + $0x8b4] sm:$0xff]
    %v657 = vld [vmem:[%s5 + $0x8bc] sm:$0xff]
    %v658 = vld [vmem:[%s5 + $0x8c4] sm:$0xff]
    %v659 = vld [vmem:[%s5 + $0x8cc] sm:$0xff]
    %v660 = vld [vmem:[%s5 + $0x8d4] sm:$0xff]
    %v661 = vld [vmem:[%s5 + $0x8dc] sm:$0xff]
    %v662 = vld [vmem:[%s5 + $0x8e4] sm:$0xf]
    %v663 = vld [vmem:[%s5 + $0x8e8] sm:$0xff]
    %v664 = vld [vmem:[%s5 + $0x8f0] sm:$0xff]
    %v665 = vld [vmem:[%s5 + $0x8f8] sm:$0xff]
    %v666 = vld [vmem:[%s5 + $0x900] sm:$0xff]
    %v667 = vld [vmem:[%s5 + $0x908] sm:$0xff]
    %v668 = vld [vmem:[%s5 + $0x910] sm:$0xff]
    %v669 = vld [vmem:[%s5 + $0x918] sm:$0xff]
    %v670 = vld [vmem:[%s5 + $0x920] sm:$0xff]
    %v671 = vld [vmem:[%s5 + $0x928] sm:$0xff]
    %v672 = vld [vmem:[%s5 + $0x930] sm:$0xf]
    %v673 = vld [vmem:[%s5 + $0x934] sm:$0xff]
    %v674 = vld [vmem:[%s5 + $0x93c] sm:$0xff]
    %v675 = vld [vmem:[%s5 + $0x944] sm:$0xff]
    %v676 = vld [vmem:[%s5 + $0x94c] sm:$0xff]
    %v677 = vld [vmem:[%s5 + $0x954] sm:$0xff]
    %v678 = vld [vmem:[%s5 + $0x95c] sm:$0xff]
    %v679 = vld [vmem:[%s5 + $0x964] sm:$0xff]
    %v680 = vld [vmem:[%s5 + $0x96c] sm:$0xff]
    %v681 = vld [vmem:[%s5 + $0x974] sm:$0xff]
    %v682 = vld [vmem:[%s5 + $0x97c] sm:$0xf]
    %v683 = vld [vmem:[%s6] sm:$0xff]
    %v684 = vld [vmem:[%s6 + $0x8] sm:$0xff]
    %v685 = vld [vmem:[%s6 + $0x10] sm:$0x7]
    %v689 = vlaneseq
    %v690 = vshrl.u32 %v689, 7
    %v691 = vsub.s32 0, %v690
    %v692 = vrot.slane %v683, %v691
    %v693 = vlaneseq
    %v694 = vshrl.u32 %v693, 7
    %v695 = vsub.s32 1, %v694
    %v696 = vrot.slane %v683, %v695
    %v697 = vlaneseq
    %v698 = vshrl.u32 %v697, 7
    %v699 = vsub.s32 2, %v698
    %v700 = vrot.slane %v683, %v699
    %v701 = vlaneseq
    %v702 = vshrl.u32 %v701, 7
    %v703 = vsub.s32 3, %v702
    %v704 = vrot.slane %v683, %v703
    %v705 = vlaneseq
    %v706 = vshrl.u32 %v705, 7
    %v707 = vsub.s32 4, %v706
    %v708 = vrot.slane %v683, %v707
    %v709 = vlaneseq
    %v710 = vshrl.u32 %v709, 7
    %v711 = vsub.s32 5, %v710
    %v712 = vrot.slane %v683, %v711
    %v713 = vlaneseq
    %v714 = vshrl.u32 %v713, 7
    %v715 = vsub.s32 6, %v714
    %v716 = vrot.slane %v683, %v715
    %v717 = vlaneseq
    %v718 = vshrl.u32 %v717, 7
    %v719 = vsub.s32 7, %v718
    %v720 = vrot.slane %v683, %v719
    %v721 = vlaneseq
    %v722 = vshrl.u32 %v721, 7
    %v723 = vsub.s32 0, %v722
    %v724 = vrot.slane %v684, %v723
    %v725 = vlaneseq
    %v726 = vshrl.u32 %v725, 7
    %v727 = vsub.s32 1, %v726
    %v728 = vrot.slane %v684, %v727
    %v729 = vlaneseq
    %v730 = vshrl.u32 %v729, 7
    %v731 = vsub.s32 2, %v730
    %v732 = vrot.slane %v684, %v731
    %v733 = vlaneseq
    %v734 = vshrl.u32 %v733, 7
    %v735 = vsub.s32 3, %v734
    %v736 = vrot.slane %v684, %v735
    %v737 = vlaneseq
    %v738 = vshrl.u32 %v737, 7
    %v739 = vsub.s32 4, %v738
    %v740 = vrot.slane %v684, %v739
    %v741 = vlaneseq
    %v742 = vshrl.u32 %v741, 7
    %v743 = vsub.s32 5, %v742
    %v744 = vrot.slane %v684, %v743
    %v745 = vlaneseq
    %v746 = vshrl.u32 %v745, 7
    %v747 = vsub.s32 6, %v746
    %v748 = vrot.slane %v684, %v747
    %v749 = vlaneseq
    %v750 = vshrl.u32 %v749, 7
    %v751 = vsub.s32 7, %v750
    %v752 = vrot.slane %v684, %v751
    %v753 = vlaneseq
    %v754 = vshrl.u32 %v753, 7
    %v755 = vsub.s32 0, %v754
    %v756 = vrot.slane %v685, %v755
    %v757 = vlaneseq
    %v758 = vshrl.u32 %v757, 7
    %v759 = vsub.s32 1, %v758
    %v760 = vrot.slane %v685, %v759
    %v761 = vlaneseq
    %v762 = vshrl.u32 %v761, 7
    %v763 = vsub.s32 2, %v762
    %v764 = vrot.slane %v685, %v763
    %v1104 = vunpack.c.l.b16 %v363
    %v1105 = vunpack.c.h.b16 %v363
    %v1106 = vunpack.c.l.b16 %v364
    %v1107 = vunpack.c.h.b16 %v364
    %v1108 = vunpack.c.l.b16 %v365
    %v1109 = vunpack.c.h.b16 %v365
    %v1110 = vunpack.c.l.b16 %v366
    %v1111 = vunpack.c.h.b16 %v366
    %v1112 = vunpack.c.l.b16 %v367
    %v1113 = vunpack.c.h.b16 %v367
    %v1114 = vunpack.c.l.b16 %v368
    %v1115 = vunpack.c.h.b16 %v368
    %v1116 = vunpack.c.l.b16 %v369
    %v1117 = vunpack.c.h.b16 %v369
    %v1118 = vunpack.c.l.b16 %v370
    %v1119 = vunpack.c.h.b16 %v370
    %v1120 = vunpack.c.l.b16 %v371
    %v1121 = vunpack.c.h.b16 %v371
    %v1122 = vunpack.c.l.b16 %v372
    %v1123 = vunpack.c.l.b16 %v373
    %v1124 = vunpack.c.h.b16 %v373
    %v1125 = vunpack.c.l.b16 %v374
    %v1126 = vunpack.c.h.b16 %v374
    %v1127 = vunpack.c.l.b16 %v375
    %v1128 = vunpack.c.h.b16 %v375
    %v1129 = vunpack.c.l.b16 %v376
    %v1130 = vunpack.c.h.b16 %v376
    %v1131 = vunpack.c.l.b16 %v377
    %v1132 = vunpack.c.h.b16 %v377
    %v1133 = vunpack.c.l.b16 %v378
    %v1134 = vunpack.c.h.b16 %v378
    %v1135 = vunpack.c.l.b16 %v379
    %v1136 = vunpack.c.h.b16 %v379
    %v1137 = vunpack.c.l.b16 %v380
    %v1138 = vunpack.c.h.b16 %v380
    %v1139 = vunpack.c.l.b16 %v381
    %v1140 = vunpack.c.h.b16 %v381
    %v1141 = vunpack.c.l.b16 %v382
    %v1142 = vunpack.c.l.b16 %v383
    %v1143 = vunpack.c.h.b16 %v383
    %v1144 = vunpack.c.l.b16 %v384
    %v1145 = vunpack.c.h.b16 %v384
    %v1146 = vunpack.c.l.b16 %v385
    %v1147 = vunpack.c.h.b16 %v385
    %v1148 = vunpack.c.l.b16 %v386
    %v1149 = vunpack.c.h.b16 %v386
    %v1150 = vunpack.c.l.b16 %v387
    %v1151 = vunpack.c.h.b16 %v387
    %v1152 = vunpack.c.l.b16 %v388
    %v1153 = vunpack.c.h.b16 %v388
    %v1154 = vunpack.c.l.b16 %v389
    %v1155 = vunpack.c.h.b16 %v389
    %v1156 = vunpack.c.l.b16 %v390
    %v1157 = vunpack.c.h.b16 %v390
    %v1158 = vunpack.c.l.b16 %v391
    %v1159 = vunpack.c.h.b16 %v391
    %v1160 = vunpack.c.l.b16 %v392
    %v1161 = vunpack.c.l.b16 %v393
    %v1162 = vunpack.c.h.b16 %v393
    %v1163 = vunpack.c.l.b16 %v394
    %v1164 = vunpack.c.h.b16 %v394
    %v1165 = vunpack.c.l.b16 %v395
    %v1166 = vunpack.c.h.b16 %v395
    %v1167 = vunpack.c.l.b16 %v396
    %v1168 = vunpack.c.h.b16 %v396
    %v1169 = vunpack.c.l.b16 %v397
    %v1170 = vunpack.c.h.b16 %v397
    %v1171 = vunpack.c.l.b16 %v398
    %v1172 = vunpack.c.h.b16 %v398
    %v1173 = vunpack.c.l.b16 %v399
    %v1174 = vunpack.c.h.b16 %v399
    %v1175 = vunpack.c.l.b16 %v400
    %v1176 = vunpack.c.h.b16 %v400
    %v1177 = vunpack.c.l.b16 %v401
    %v1178 = vunpack.c.h.b16 %v401
    %v1179 = vunpack.c.l.b16 %v402
    %v1180 = vunpack.c.l.b16 %v403
    %v1181 = vunpack.c.h.b16 %v403
    %v1182 = vunpack.c.l.b16 %v404
    %v1183 = vunpack.c.h.b16 %v404
    %v1184 = vunpack.c.l.b16 %v405
    %v1185 = vunpack.c.h.b16 %v405
    %v1186 = vunpack.c.l.b16 %v406
    %v1187 = vunpack.c.h.b16 %v406
    %v1188 = vunpack.c.l.b16 %v407
    %v1189 = vunpack.c.h.b16 %v407
    %v1190 = vunpack.c.l.b16 %v408
    %v1191 = vunpack.c.h.b16 %v408
    %v1192 = vunpack.c.l.b16 %v409
    %v1193 = vunpack.c.h.b16 %v409
    %v1194 = vunpack.c.l.b16 %v410
    %v1195 = vunpack.c.h.b16 %v410
    %v1196 = vunpack.c.l.b16 %v411
    %v1197 = vunpack.c.h.b16 %v411
    %v1198 = vunpack.c.l.b16 %v412
    %v1199 = vunpack.c.l.b16 %v413
    %v1200 = vunpack.c.h.b16 %v413
    %v1201 = vunpack.c.l.b16 %v414
    %v1202 = vunpack.c.h.b16 %v414
    %v1203 = vunpack.c.l.b16 %v415
    %v1204 = vunpack.c.h.b16 %v415
    %v1205 = vunpack.c.l.b16 %v416
    %v1206 = vunpack.c.h.b16 %v416
    %v1207 = vunpack.c.l.b16 %v417
    %v1208 = vunpack.c.h.b16 %v417
    %v1209 = vunpack.c.l.b16 %v418
    %v1210 = vunpack.c.h.b16 %v418
    %v1211 = vunpack.c.l.b16 %v419
    %v1212 = vunpack.c.h.b16 %v419
    %v1213 = vunpack.c.l.b16 %v420
    %v1214 = vunpack.c.h.b16 %v420
    %v1215 = vunpack.c.l.b16 %v421
    %v1216 = vunpack.c.h.b16 %v421
    %v1217 = vunpack.c.l.b16 %v422
    %v1218 = vunpack.c.l.b16 %v423
    %v1219 = vunpack.c.h.b16 %v423
    %v1220 = vunpack.c.l.b16 %v424
    %v1221 = vunpack.c.h.b16 %v424
    %v1222 = vunpack.c.l.b16 %v425
    %v1223 = vunpack.c.h.b16 %v425
    %v1224 = vunpack.c.l.b16 %v426
    %v1225 = vunpack.c.h.b16 %v426
    %v1226 = vunpack.c.l.b16 %v427
    %v1227 = vunpack.c.h.b16 %v427
    %v1228 = vunpack.c.l.b16 %v428
    %v1229 = vunpack.c.h.b16 %v428
    %v1230 = vunpack.c.l.b16 %v429
    %v1231 = vunpack.c.h.b16 %v429
    %v1232 = vunpack.c.l.b16 %v430
    %v1233 = vunpack.c.h.b16 %v430
    %v1234 = vunpack.c.l.b16 %v431
    %v1235 = vunpack.c.h.b16 %v431
    %v1236 = vunpack.c.l.b16 %v432
    %v1237 = vunpack.c.l.b16 %v433
    %v1238 = vunpack.c.h.b16 %v433
    %v1239 = vunpack.c.l.b16 %v434
    %v1240 = vunpack.c.h.b16 %v434
    %v1241 = vunpack.c.l.b16 %v435
    %v1242 = vunpack.c.h.b16 %v435
    %v1243 = vunpack.c.l.b16 %v436
    %v1244 = vunpack.c.h.b16 %v436
    %v1245 = vunpack.c.l.b16 %v437
    %v1246 = vunpack.c.h.b16 %v437
    %v1247 = vunpack.c.l.b16 %v438
    %v1248 = vunpack.c.h.b16 %v438
    %v1249 = vunpack.c.l.b16 %v439
    %v1250 = vunpack.c.h.b16 %v439
    %v1251 = vunpack.c.l.b16 %v440
    %v1252 = vunpack.c.h.b16 %v440
    %v1253 = vunpack.c.l.b16 %v441
    %v1254 = vunpack.c.h.b16 %v441
    %v1255 = vunpack.c.l.b16 %v442
    %v1256 = vunpack.c.l.b16 %v443
    %v1257 = vunpack.c.h.b16 %v443
    %v1258 = vunpack.c.l.b16 %v444
    %v1259 = vunpack.c.h.b16 %v444
    %v1260 = vunpack.c.l.b16 %v445
    %v1261 = vunpack.c.h.b16 %v445
    %v1262 = vunpack.c.l.b16 %v446
    %v1263 = vunpack.c.h.b16 %v446
    %v1264 = vunpack.c.l.b16 %v447
    %v1265 = vunpack.c.h.b16 %v447
    %v1266 = vunpack.c.l.b16 %v448
    %v1267 = vunpack.c.h.b16 %v448
    %v1268 = vunpack.c.l.b16 %v449
    %v1269 = vunpack.c.h.b16 %v449
    %v1270 = vunpack.c.l.b16 %v450
    %v1271 = vunpack.c.h.b16 %v450
    %v1272 = vunpack.c.l.b16 %v451
    %v1273 = vunpack.c.h.b16 %v451
    %v1274 = vunpack.c.l.b16 %v452
    %v1275 = vunpack.c.l.b16 %v453
    %v1276 = vunpack.c.h.b16 %v453
    %v1277 = vunpack.c.l.b16 %v454
    %v1278 = vunpack.c.h.b16 %v454
    %v1279 = vunpack.c.l.b16 %v455
    %v1280 = vunpack.c.h.b16 %v455
    %v1281 = vunpack.c.l.b16 %v456
    %v1282 = vunpack.c.h.b16 %v456
    %v1283 = vunpack.c.l.b16 %v457
    %v1284 = vunpack.c.h.b16 %v457
    %v1285 = vunpack.c.l.b16 %v458
    %v1286 = vunpack.c.h.b16 %v458
    %v1287 = vunpack.c.l.b16 %v459
    %v1288 = vunpack.c.h.b16 %v459
    %v1289 = vunpack.c.l.b16 %v460
    %v1290 = vunpack.c.h.b16 %v460
    %v1291 = vunpack.c.l.b16 %v461
    %v1292 = vunpack.c.h.b16 %v461
    %v1293 = vunpack.c.l.b16 %v462
    %v1294 = vunpack.c.l.b16 %v463
    %v1295 = vunpack.c.h.b16 %v463
    %v1296 = vunpack.c.l.b16 %v464
    %v1297 = vunpack.c.h.b16 %v464
    %v1298 = vunpack.c.l.b16 %v465
    %v1299 = vunpack.c.h.b16 %v465
    %v1300 = vunpack.c.l.b16 %v466
    %v1301 = vunpack.c.h.b16 %v466
    %v1302 = vunpack.c.l.b16 %v467
    %v1303 = vunpack.c.h.b16 %v467
    %v1304 = vunpack.c.l.b16 %v468
    %v1305 = vunpack.c.h.b16 %v468
    %v1306 = vunpack.c.l.b16 %v469
    %v1307 = vunpack.c.h.b16 %v469
    %v1308 = vunpack.c.l.b16 %v470
    %v1309 = vunpack.c.h.b16 %v470
    %v1310 = vunpack.c.l.b16 %v471
    %v1311 = vunpack.c.h.b16 %v471
    %v1312 = vunpack.c.l.b16 %v472
    %v1313 = vunpack.c.l.b16 %v473
    %v1314 = vunpack.c.h.b16 %v473
    %v1315 = vunpack.c.l.b16 %v474
    %v1316 = vunpack.c.h.b16 %v474
    %v1317 = vunpack.c.l.b16 %v475
    %v1318 = vunpack.c.h.b16 %v475
    %v1319 = vunpack.c.l.b16 %v476
    %v1320 = vunpack.c.h.b16 %v476
    %v1321 = vunpack.c.l.b16 %v477
    %v1322 = vunpack.c.h.b16 %v477
    %v1323 = vunpack.c.l.b16 %v478
    %v1324 = vunpack.c.h.b16 %v478
    %v1325 = vunpack.c.l.b16 %v479
    %v1326 = vunpack.c.h.b16 %v479
    %v1327 = vunpack.c.l.b16 %v480
    %v1328 = vunpack.c.h.b16 %v480
    %v1329 = vunpack.c.l.b16 %v481
    %v1330 = vunpack.c.h.b16 %v481
    %v1331 = vunpack.c.l.b16 %v482
    %v1332 = vunpack.c.l.b16 %v483
    %v1333 = vunpack.c.h.b16 %v483
    %v1334 = vunpack.c.l.b16 %v484
    %v1335 = vunpack.c.h.b16 %v484
    %v1336 = vunpack.c.l.b16 %v485
    %v1337 = vunpack.c.h.b16 %v485
    %v1338 = vunpack.c.l.b16 %v486
    %v1339 = vunpack.c.h.b16 %v486
    %v1340 = vunpack.c.l.b16 %v487
    %v1341 = vunpack.c.h.b16 %v487
    %v1342 = vunpack.c.l.b16 %v488
    %v1343 = vunpack.c.h.b16 %v488
    %v1344 = vunpack.c.l.b16 %v489
    %v1345 = vunpack.c.h.b16 %v489
    %v1346 = vunpack.c.l.b16 %v490
    %v1347 = vunpack.c.h.b16 %v490
    %v1348 = vunpack.c.l.b16 %v491
    %v1349 = vunpack.c.h.b16 %v491
    %v1350 = vunpack.c.l.b16 %v492
    %v1351 = vunpack.c.l.b16 %v493
    %v1352 = vunpack.c.h.b16 %v493
    %v1353 = vunpack.c.l.b16 %v494
    %v1354 = vunpack.c.h.b16 %v494
    %v1355 = vunpack.c.l.b16 %v495
    %v1356 = vunpack.c.h.b16 %v495
    %v1357 = vunpack.c.l.b16 %v496
    %v1358 = vunpack.c.h.b16 %v496
    %v1359 = vunpack.c.l.b16 %v497
    %v1360 = vunpack.c.h.b16 %v497
    %v1361 = vunpack.c.l.b16 %v498
    %v1362 = vunpack.c.h.b16 %v498
    %v1363 = vunpack.c.l.b16 %v499
    %v1364 = vunpack.c.h.b16 %v499
    %v1365 = vunpack.c.l.b16 %v500
    %v1366 = vunpack.c.h.b16 %v500
    %v1367 = vunpack.c.l.b16 %v501
    %v1368 = vunpack.c.h.b16 %v501
    %v1369 = vunpack.c.l.b16 %v502
    %v1370 = vunpack.c.l.b16 %v503
    %v1371 = vunpack.c.h.b16 %v503
    %v1372 = vunpack.c.l.b16 %v504
    %v1373 = vunpack.c.h.b16 %v504
    %v1374 = vunpack.c.l.b16 %v505
    %v1375 = vunpack.c.h.b16 %v505
    %v1376 = vunpack.c.l.b16 %v506
    %v1377 = vunpack.c.h.b16 %v506
    %v1378 = vunpack.c.l.b16 %v507
    %v1379 = vunpack.c.h.b16 %v507
    %v1380 = vunpack.c.l.b16 %v508
    %v1381 = vunpack.c.h.b16 %v508
    %v1382 = vunpack.c.l.b16 %v509
    %v1383 = vunpack.c.h.b16 %v509
    %v1384 = vunpack.c.l.b16 %v510
    %v1385 = vunpack.c.h.b16 %v510
    %v1386 = vunpack.c.l.b16 %v511
    %v1387 = vunpack.c.h.b16 %v511
    %v1388 = vunpack.c.l.b16 %v512
    %v1389 = vunpack.c.l.b16 %v513
    %v1390 = vunpack.c.h.b16 %v513
    %v1391 = vunpack.c.l.b16 %v514
    %v1392 = vunpack.c.h.b16 %v514
    %v1393 = vunpack.c.l.b16 %v515
    %v1394 = vunpack.c.h.b16 %v515
    %v1395 = vunpack.c.l.b16 %v516
    %v1396 = vunpack.c.h.b16 %v516
    %v1397 = vunpack.c.l.b16 %v517
    %v1398 = vunpack.c.h.b16 %v517
    %v1399 = vunpack.c.l.b16 %v518
    %v1400 = vunpack.c.h.b16 %v518
    %v1401 = vunpack.c.l.b16 %v519
    %v1402 = vunpack.c.h.b16 %v519
    %v1403 = vunpack.c.l.b16 %v520
    %v1404 = vunpack.c.h.b16 %v520
    %v1405 = vunpack.c.l.b16 %v521
    %v1406 = vunpack.c.h.b16 %v521
    %v1407 = vunpack.c.l.b16 %v522
    %v1408 = vunpack.c.l.b16 %v523
    %v1409 = vunpack.c.h.b16 %v523
    %v1410 = vunpack.c.l.b16 %v524
    %v1411 = vunpack.c.h.b16 %v524
    %v1412 = vunpack.c.l.b16 %v525
    %v1413 = vunpack.c.h.b16 %v525
    %v1414 = vunpack.c.l.b16 %v526
    %v1415 = vunpack.c.h.b16 %v526
    %v1416 = vunpack.c.l.b16 %v527
    %v1417 = vunpack.c.h.b16 %v527
    %v1418 = vunpack.c.l.b16 %v528
    %v1419 = vunpack.c.h.b16 %v528
    %v1420 = vunpack.c.l.b16 %v529
    %v1421 = vunpack.c.h.b16 %v529
    %v1422 = vunpack.c.l.b16 %v530
    %v1423 = vunpack.c.h.b16 %v530
    %v1424 = vunpack.c.l.b16 %v531
    %v1425 = vunpack.c.h.b16 %v531
    %v1426 = vunpack.c.l.b16 %v532
    %v1427 = vunpack.c.l.b16 %v533
    %v1428 = vunpack.c.h.b16 %v533
    %v1429 = vunpack.c.l.b16 %v534
    %v1430 = vunpack.c.h.b16 %v534
    %v1431 = vunpack.c.l.b16 %v535
    %v1432 = vunpack.c.h.b16 %v535
    %v1433 = vunpack.c.l.b16 %v536
    %v1434 = vunpack.c.h.b16 %v536
    %v1435 = vunpack.c.l.b16 %v537
    %v1436 = vunpack.c.h.b16 %v537
    %v1437 = vunpack.c.l.b16 %v538
    %v1438 = vunpack.c.h.b16 %v538
    %v1439 = vunpack.c.l.b16 %v539
    %v1440 = vunpack.c.h.b16 %v539
    %v1441 = vunpack.c.l.b16 %v540
    %v1442 = vunpack.c.h.b16 %v540
    %v1443 = vunpack.c.l.b16 %v541
    %v1444 = vunpack.c.h.b16 %v541
    %v1445 = vunpack.c.l.b16 %v542
    %v1446 = vunpack.c.l.b16 %v543
    %v1447 = vunpack.c.h.b16 %v543
    %v1448 = vunpack.c.l.b16 %v544
    %v1449 = vunpack.c.h.b16 %v544
    %v1450 = vunpack.c.l.b16 %v545
    %v1451 = vunpack.c.h.b16 %v545
    %v1452 = vunpack.c.l.b16 %v546
    %v1453 = vunpack.c.h.b16 %v546
    %v1454 = vunpack.c.l.b16 %v547
    %v1455 = vunpack.c.h.b16 %v547
    %v1456 = vunpack.c.l.b16 %v548
    %v1457 = vunpack.c.h.b16 %v548
    %v1458 = vunpack.c.l.b16 %v549
    %v1459 = vunpack.c.h.b16 %v549
    %v1460 = vunpack.c.l.b16 %v550
    %v1461 = vunpack.c.h.b16 %v550
    %v1462 = vunpack.c.l.b16 %v551
    %v1463 = vunpack.c.h.b16 %v551
    %v1464 = vunpack.c.l.b16 %v552
    %v1465 = vunpack.c.l.b16 %v553
    %v1466 = vunpack.c.h.b16 %v553
    %v1467 = vunpack.c.l.b16 %v554
    %v1468 = vunpack.c.h.b16 %v554
    %v1469 = vunpack.c.l.b16 %v555
    %v1470 = vunpack.c.h.b16 %v555
    %v1471 = vunpack.c.l.b16 %v556
    %v1472 = vunpack.c.h.b16 %v556
    %v1473 = vunpack.c.l.b16 %v557
    %v1474 = vunpack.c.h.b16 %v557
    %v1475 = vunpack.c.l.b16 %v558
    %v1476 = vunpack.c.h.b16 %v558
    %v1477 = vunpack.c.l.b16 %v559
    %v1478 = vunpack.c.h.b16 %v559
    %v1479 = vunpack.c.l.b16 %v560
    %v1480 = vunpack.c.h.b16 %v560
    %v1481 = vunpack.c.l.b16 %v561
    %v1482 = vunpack.c.h.b16 %v561
    %v1483 = vunpack.c.l.b16 %v562
    %v1484 = vunpack.c.l.b16 %v563
    %v1485 = vunpack.c.h.b16 %v563
    %v1486 = vunpack.c.l.b16 %v564
    %v1487 = vunpack.c.h.b16 %v564
    %v1488 = vunpack.c.l.b16 %v565
    %v1489 = vunpack.c.h.b16 %v565
    %v1490 = vunpack.c.l.b16 %v566
    %v1491 = vunpack.c.h.b16 %v566
    %v1492 = vunpack.c.l.b16 %v567
    %v1493 = vunpack.c.h.b16 %v567
    %v1494 = vunpack.c.l.b16 %v568
    %v1495 = vunpack.c.h.b16 %v568
    %v1496 = vunpack.c.l.b16 %v569
    %v1497 = vunpack.c.h.b16 %v569
    %v1498 = vunpack.c.l.b16 %v570
    %v1499 = vunpack.c.h.b16 %v570
    %v1500 = vunpack.c.l.b16 %v571
    %v1501 = vunpack.c.h.b16 %v571
    %v1502 = vunpack.c.l.b16 %v572
    %v1503 = vunpack.c.l.b16 %v573
    %v1504 = vunpack.c.h.b16 %v573
    %v1505 = vunpack.c.l.b16 %v574
    %v1506 = vunpack.c.h.b16 %v574
    %v1507 = vunpack.c.l.b16 %v575
    %v1508 = vunpack.c.h.b16 %v575
    %v1509 = vunpack.c.l.b16 %v576
    %v1510 = vunpack.c.h.b16 %v576
    %v1511 = vunpack.c.l.b16 %v577
    %v1512 = vunpack.c.h.b16 %v577
    %v1513 = vunpack.c.l.b16 %v578
    %v1514 = vunpack.c.h.b16 %v578
    %v1515 = vunpack.c.l.b16 %v579
    %v1516 = vunpack.c.h.b16 %v579
    %v1517 = vunpack.c.l.b16 %v580
    %v1518 = vunpack.c.h.b16 %v580
    %v1519 = vunpack.c.l.b16 %v581
    %v1520 = vunpack.c.h.b16 %v581
    %v1521 = vunpack.c.l.b16 %v582
    %v1522 = vunpack.c.l.b16 %v583
    %v1523 = vunpack.c.h.b16 %v583
    %v1524 = vunpack.c.l.b16 %v584
    %v1525 = vunpack.c.h.b16 %v584
    %v1526 = vunpack.c.l.b16 %v585
    %v1527 = vunpack.c.h.b16 %v585
    %v1528 = vunpack.c.l.b16 %v586
    %v1529 = vunpack.c.h.b16 %v586
    %v1530 = vunpack.c.l.b16 %v587
    %v1531 = vunpack.c.h.b16 %v587
    %v1532 = vunpack.c.l.b16 %v588
    %v1533 = vunpack.c.h.b16 %v588
    %v1534 = vunpack.c.l.b16 %v589
    %v1535 = vunpack.c.h.b16 %v589
    %v1536 = vunpack.c.l.b16 %v590
    %v1537 = vunpack.c.h.b16 %v590
    %v1538 = vunpack.c.l.b16 %v591
    %v1539 = vunpack.c.h.b16 %v591
    %v1540 = vunpack.c.l.b16 %v592
    %v1541 = vunpack.c.l.b16 %v593
    %v1542 = vunpack.c.h.b16 %v593
    %v1543 = vunpack.c.l.b16 %v594
    %v1544 = vunpack.c.h.b16 %v594
    %v1545 = vunpack.c.l.b16 %v595
    %v1546 = vunpack.c.h.b16 %v595
    %v1547 = vunpack.c.l.b16 %v596
    %v1548 = vunpack.c.h.b16 %v596
    %v1549 = vunpack.c.l.b16 %v597
    %v1550 = vunpack.c.h.b16 %v597
    %v1551 = vunpack.c.l.b16 %v598
    %v1552 = vunpack.c.h.b16 %v598
    %v1553 = vunpack.c.l.b16 %v599
    %v1554 = vunpack.c.h.b16 %v599
    %v1555 = vunpack.c.l.b16 %v600
    %v1556 = vunpack.c.h.b16 %v600
    %v1557 = vunpack.c.l.b16 %v601
    %v1558 = vunpack.c.h.b16 %v601
    %v1559 = vunpack.c.l.b16 %v602
    %v1560 = vunpack.c.l.b16 %v603
    %v1561 = vunpack.c.h.b16 %v603
    %v1562 = vunpack.c.l.b16 %v604
    %v1563 = vunpack.c.h.b16 %v604
    %v1564 = vunpack.c.l.b16 %v605
    %v1565 = vunpack.c.h.b16 %v605
    %v1566 = vunpack.c.l.b16 %v606
    %v1567 = vunpack.c.h.b16 %v606
    %v1568 = vunpack.c.l.b16 %v607
    %v1569 = vunpack.c.h.b16 %v607
    %v1570 = vunpack.c.l.b16 %v608
    %v1571 = vunpack.c.h.b16 %v608
    %v1572 = vunpack.c.l.b16 %v609
    %v1573 = vunpack.c.h.b16 %v609
    %v1574 = vunpack.c.l.b16 %v610
    %v1575 = vunpack.c.h.b16 %v610
    %v1576 = vunpack.c.l.b16 %v611
    %v1577 = vunpack.c.h.b16 %v611
    %v1578 = vunpack.c.l.b16 %v612
    %v1579 = vunpack.c.l.b16 %v613
    %v1580 = vunpack.c.h.b16 %v613
    %v1581 = vunpack.c.l.b16 %v614
    %v1582 = vunpack.c.h.b16 %v614
    %v1583 = vunpack.c.l.b16 %v615
    %v1584 = vunpack.c.h.b16 %v615
    %v1585 = vunpack.c.l.b16 %v616
    %v1586 = vunpack.c.h.b16 %v616
    %v1587 = vunpack.c.l.b16 %v617
    %v1588 = vunpack.c.h.b16 %v617
    %v1589 = vunpack.c.l.b16 %v618
    %v1590 = vunpack.c.h.b16 %v618
    %v1591 = vunpack.c.l.b16 %v619
    %v1592 = vunpack.c.h.b16 %v619
    %v1593 = vunpack.c.l.b16 %v620
    %v1594 = vunpack.c.h.b16 %v620
    %v1595 = vunpack.c.l.b16 %v621
    %v1596 = vunpack.c.h.b16 %v621
    %v1597 = vunpack.c.l.b16 %v622
    %v1598 = vunpack.c.l.b16 %v623
    %v1599 = vunpack.c.h.b16 %v623
    %v1600 = vunpack.c.l.b16 %v624
    %v1601 = vunpack.c.h.b16 %v624
    %v1602 = vunpack.c.l.b16 %v625
    %v1603 = vunpack.c.h.b16 %v625
    %v1604 = vunpack.c.l.b16 %v626
    %v1605 = vunpack.c.h.b16 %v626
    %v1606 = vunpack.c.l.b16 %v627
    %v1607 = vunpack.c.h.b16 %v627
    %v1608 = vunpack.c.l.b16 %v628
    %v1609 = vunpack.c.h.b16 %v628
    %v1610 = vunpack.c.l.b16 %v629
    %v1611 = vunpack.c.h.b16 %v629
    %v1612 = vunpack.c.l.b16 %v630
    %v1613 = vunpack.c.h.b16 %v630
    %v1614 = vunpack.c.l.b16 %v631
    %v1615 = vunpack.c.h.b16 %v631
    %v1616 = vunpack.c.l.b16 %v632
    %v1617 = vunpack.c.l.b16 %v633
    %v1618 = vunpack.c.h.b16 %v633
    %v1619 = vunpack.c.l.b16 %v634
    %v1620 = vunpack.c.h.b16 %v634
    %v1621 = vunpack.c.l.b16 %v635
    %v1622 = vunpack.c.h.b16 %v635
    %v1623 = vunpack.c.l.b16 %v636
    %v1624 = vunpack.c.h.b16 %v636
    %v1625 = vunpack.c.l.b16 %v637
    %v1626 = vunpack.c.h.b16 %v637
    %v1627 = vunpack.c.l.b16 %v638
    %v1628 = vunpack.c.h.b16 %v638
    %v1629 = vunpack.c.l.b16 %v639
    %v1630 = vunpack.c.h.b16 %v639
    %v1631 = vunpack.c.l.b16 %v640
    %v1632 = vunpack.c.h.b16 %v640
    %v1633 = vunpack.c.l.b16 %v641
    %v1634 = vunpack.c.h.b16 %v641
    %v1635 = vunpack.c.l.b16 %v642
    %v1636 = vunpack.c.l.b16 %v643
    %v1637 = vunpack.c.h.b16 %v643
    %v1638 = vunpack.c.l.b16 %v644
    %v1639 = vunpack.c.h.b16 %v644
    %v1640 = vunpack.c.l.b16 %v645
    %v1641 = vunpack.c.h.b16 %v645
    %v1642 = vunpack.c.l.b16 %v646
    %v1643 = vunpack.c.h.b16 %v646
    %v1644 = vunpack.c.l.b16 %v647
    %v1645 = vunpack.c.h.b16 %v647
    %v1646 = vunpack.c.l.b16 %v648
    %v1647 = vunpack.c.h.b16 %v648
    %v1648 = vunpack.c.l.b16 %v649
    %v1649 = vunpack.c.h.b16 %v649
    %v1650 = vunpack.c.l.b16 %v650
    %v1651 = vunpack.c.h.b16 %v650
    %v1652 = vunpack.c.l.b16 %v651
    %v1653 = vunpack.c.h.b16 %v651
    %v1654 = vunpack.c.l.b16 %v652
    %v1655 = vunpack.c.l.b16 %v653
    %v1656 = vunpack.c.h.b16 %v653
    %v1657 = vunpack.c.l.b16 %v654
    %v1658 = vunpack.c.h.b16 %v654
    %v1659 = vunpack.c.l.b16 %v655
    %v1660 = vunpack.c.h.b16 %v655
    %v1661 = vunpack.c.l.b16 %v656
    %v1662 = vunpack.c.h.b16 %v656
    %v1663 = vunpack.c.l.b16 %v657
    %v1664 = vunpack.c.h.b16 %v657
    %v1665 = vunpack.c.l.b16 %v658
    %v1666 = vunpack.c.h.b16 %v658
    %v1667 = vunpack.c.l.b16 %v659
    %v1668 = vunpack.c.h.b16 %v659
    %v1669 = vunpack.c.l.b16 %v660
    %v1670 = vunpack.c.h.b16 %v660
    %v1671 = vunpack.c.l.b16 %v661
    %v1672 = vunpack.c.h.b16 %v661
    %v1673 = vunpack.c.l.b16 %v662
    %v1674 = vunpack.c.l.b16 %v663
    %v1675 = vunpack.c.h.b16 %v663
    %v1676 = vunpack.c.l.b16 %v664
    %v1677 = vunpack.c.h.b16 %v664
    %v1678 = vunpack.c.l.b16 %v665
    %v1679 = vunpack.c.h.b16 %v665
    %v1680 = vunpack.c.l.b16 %v666
    %v1681 = vunpack.c.h.b16 %v666
    %v1682 = vunpack.c.l.b16 %v667
    %v1683 = vunpack.c.h.b16 %v667
    %v1684 = vunpack.c.l.b16 %v668
    %v1685 = vunpack.c.h.b16 %v668
    %v1686 = vunpack.c.l.b16 %v669
    %v1687 = vunpack.c.h.b16 %v669
    %v1688 = vunpack.c.l.b16 %v670
    %v1689 = vunpack.c.h.b16 %v670
    %v1690 = vunpack.c.l.b16 %v671
    %v1691 = vunpack.c.h.b16 %v671
    %v1692 = vunpack.c.l.b16 %v672
    %v1693 = vunpack.c.l.b16 %v673
    %v1694 = vunpack.c.h.b16 %v673
    %v1695 = vunpack.c.l.b16 %v674
    %v1696 = vunpack.c.h.b16 %v674
    %v1697 = vunpack.c.l.b16 %v675
    %v1698 = vunpack.c.h.b16 %v675
    %v1699 = vunpack.c.l.b16 %v676
    %v1700 = vunpack.c.h.b16 %v676
    %v1701 = vunpack.c.l.b16 %v677
    %v1702 = vunpack.c.h.b16 %v677
    %v1703 = vunpack.c.l.b16 %v678
    %v1704 = vunpack.c.h.b16 %v678
    %v1705 = vunpack.c.l.b16 %v679
    %v1706 = vunpack.c.h.b16 %v679
    %v1707 = vunpack.c.l.b16 %v680
    %v1708 = vunpack.c.h.b16 %v680
    %v1709 = vunpack.c.l.b16 %v681
    %v1710 = vunpack.c.h.b16 %v681
    %v1711 = vunpack.c.l.b16 %v682
    %v1712 = vpack.c.b16 %v1123, %v1104
    %v1713 = vpack.c.b16 %v1124, %v1105
    %v1714 = vpack.c.b16 %v1125, %v1106
    %v1715 = vpack.c.b16 %v1126, %v1107
    %v1716 = vpack.c.b16 %v1127, %v1108
    %v1717 = vpack.c.b16 %v1128, %v1109
    %v1718 = vpack.c.b16 %v1129, %v1110
    %v1719 = vpack.c.b16 %v1130, %v1111
    %v1720 = vpack.c.b16 %v1131, %v1112
    %v1721 = vpack.c.b16 %v1132, %v1113
    %v1722 = vpack.c.b16 %v1133, %v1114
    %v1723 = vpack.c.b16 %v1134, %v1115
    %v1724 = vpack.c.b16 %v1135, %v1116
    %v1725 = vpack.c.b16 %v1136, %v1117
    %v1726 = vpack.c.b16 %v1137, %v1118
    %v1727 = vpack.c.b16 %v1138, %v1119
    %v1728 = vpack.c.b16 %v1139, %v1120
    %v1729 = vpack.c.b16 %v1140, %v1121
    %v1730 = vpack.c.b16 %v1141, %v1122
    %v1731 = vpack.c.b16 %v1161, %v1142
    %v1732 = vpack.c.b16 %v1162, %v1143
    %v1733 = vpack.c.b16 %v1163, %v1144
    %v1734 = vpack.c.b16 %v1164, %v1145
    %v1735 = vpack.c.b16 %v1165, %v1146
    %v1736 = vpack.c.b16 %v1166, %v1147
    %v1737 = vpack.c.b16 %v1167, %v1148
    %v1738 = vpack.c.b16 %v1168, %v1149
    %v1739 = vpack.c.b16 %v1169, %v1150
    %v1740 = vpack.c.b16 %v1170, %v1151
    %v1741 = vpack.c.b16 %v1171, %v1152
    %v1742 = vpack.c.b16 %v1172, %v1153
    %v1743 = vpack.c.b16 %v1173, %v1154
    %v1744 = vpack.c.b16 %v1174, %v1155
    %v1745 = vpack.c.b16 %v1175, %v1156
    %v1746 = vpack.c.b16 %v1176, %v1157
    %v1747 = vpack.c.b16 %v1177, %v1158
    %v1748 = vpack.c.b16 %v1178, %v1159
    %v1749 = vpack.c.b16 %v1179, %v1160
    %v1750 = vpack.c.b16 %v1199, %v1180
    %v1751 = vpack.c.b16 %v1200, %v1181
    %v1752 = vpack.c.b16 %v1201, %v1182
    %v1753 = vpack.c.b16 %v1202, %v1183
    %v1754 = vpack.c.b16 %v1203, %v1184
    %v1755 = vpack.c.b16 %v1204, %v1185
    %v1756 = vpack.c.b16 %v1205, %v1186
    %v1757 = vpack.c.b16 %v1206, %v1187
    %v1758 = vpack.c.b16 %v1207, %v1188
    %v1759 = vpack.c.b16 %v1208, %v1189
    %v1760 = vpack.c.b16 %v1209, %v1190
    %v1761 = vpack.c.b16 %v1210, %v1191
    %v1762 = vpack.c.b16 %v1211, %v1192
    %v1763 = vpack.c.b16 %v1212, %v1193
    %v1764 = vpack.c.b16 %v1213, %v1194
    %v1765 = vpack.c.b16 %v1214, %v1195
    %v1766 = vpack.c.b16 %v1215, %v1196
    %v1767 = vpack.c.b16 %v1216, %v1197
    %v1768 = vpack.c.b16 %v1217, %v1198
    %v1769 = vpack.c.b16 %v1237, %v1218
    %v1770 = vpack.c.b16 %v1238, %v1219
    %v1771 = vpack.c.b16 %v1239, %v1220
    %v1772 = vpack.c.b16 %v1240, %v1221
    %v1773 = vpack.c.b16 %v1241, %v1222
    %v1774 = vpack.c.b16 %v1242, %v1223
    %v1775 = vpack.c.b16 %v1243, %v1224
    %v1776 = vpack.c.b16 %v1244, %v1225
    %v1777 = vpack.c.b16 %v1245, %v1226
    %v1778 = vpack.c.b16 %v1246, %v1227
    %v1779 = vpack.c.b16 %v1247, %v1228
    %v1780 = vpack.c.b16 %v1248, %v1229
    %v1781 = vpack.c.b16 %v1249, %v1230
    %v1782 = vpack.c.b16 %v1250, %v1231
    %v1783 = vpack.c.b16 %v1251, %v1232
    %v1784 = vpack.c.b16 %v1252, %v1233
    %v1785 = vpack.c.b16 %v1253, %v1234
    %v1786 = vpack.c.b16 %v1254, %v1235
    %v1787 = vpack.c.b16 %v1255, %v1236
    %v1788 = vpack.c.b16 %v1275, %v1256
    %v1789 = vpack.c.b16 %v1276, %v1257
    %v1790 = vpack.c.b16 %v1277, %v1258
    %v1791 = vpack.c.b16 %v1278, %v1259
    %v1792 = vpack.c.b16 %v1279, %v1260
    %v1793 = vpack.c.b16 %v1280, %v1261
    %v1794 = vpack.c.b16 %v1281, %v1262
    %v1795 = vpack.c.b16 %v1282, %v1263
    %v1796 = vpack.c.b16 %v1283, %v1264
    %v1797 = vpack.c.b16 %v1284, %v1265
    %v1798 = vpack.c.b16 %v1285, %v1266
    %v1799 = vpack.c.b16 %v1286, %v1267
    %v1800 = vpack.c.b16 %v1287, %v1268
    %v1801 = vpack.c.b16 %v1288, %v1269
    %v1802 = vpack.c.b16 %v1289, %v1270
    %v1803 = vpack.c.b16 %v1290, %v1271
    %v1804 = vpack.c.b16 %v1291, %v1272
    %v1805 = vpack.c.b16 %v1292, %v1273
    %v1806 = vpack.c.b16 %v1293, %v1274
    %v1807 = vpack.c.b16 %v1313, %v1294
    %v1808 = vpack.c.b16 %v1314, %v1295
    %v1809 = vpack.c.b16 %v1315, %v1296
    %v1810 = vpack.c.b16 %v1316, %v1297
    %v1811 = vpack.c.b16 %v1317, %v1298
    %v1812 = vpack.c.b16 %v1318, %v1299
    %v1813 = vpack.c.b16 %v1319, %v1300
    %v1814 = vpack.c.b16 %v1320, %v1301
    %v1815 = vpack.c.b16 %v1321, %v1302
    %v1816 = vpack.c.b16 %v1322, %v1303
    %v1817 = vpack.c.b16 %v1323, %v1304
    %v1818 = vpack.c.b16 %v1324, %v1305
    %v1819 = vpack.c.b16 %v1325, %v1306
    %v1820 = vpack.c.b16 %v1326, %v1307
    %v1821 = vpack.c.b16 %v1327, %v1308
    %v1822 = vpack.c.b16 %v1328, %v1309
    %v1823 = vpack.c.b16 %v1329, %v1310
    %v1824 = vpack.c.b16 %v1330, %v1311
    %v1825 = vpack.c.b16 %v1331, %v1312
    %v1826 = vpack.c.b16 %v1351, %v1332
    %v1827 = vpack.c.b16 %v1352, %v1333
    %v1828 = vpack.c.b16 %v1353, %v1334
    %v1829 = vpack.c.b16 %v1354, %v1335
    %v1830 = vpack.c.b16 %v1355, %v1336
    %v1831 = vpack.c.b16 %v1356, %v1337
    %v1832 = vpack.c.b16 %v1357, %v1338
    %v1833 = vpack.c.b16 %v1358, %v1339
    %v1834 = vpack.c.b16 %v1359, %v1340
    %v1835 = vpack.c.b16 %v1360, %v1341
    %v1836 = vpack.c.b16 %v1361, %v1342
    %v1837 = vpack.c.b16 %v1362, %v1343
    %v1838 = vpack.c.b16 %v1363, %v1344
    %v1839 = vpack.c.b16 %v1364, %v1345
    %v1840 = vpack.c.b16 %v1365, %v1346
    %v1841 = vpack.c.b16 %v1366, %v1347
    %v1842 = vpack.c.b16 %v1367, %v1348
    %v1843 = vpack.c.b16 %v1368, %v1349
    %v1844 = vpack.c.b16 %v1369, %v1350
    %v1845 = vpack.c.b16 %v1389, %v1370
    %v1846 = vpack.c.b16 %v1390, %v1371
    %v1847 = vpack.c.b16 %v1391, %v1372
    %v1848 = vpack.c.b16 %v1392, %v1373
    %v1849 = vpack.c.b16 %v1393, %v1374
    %v1850 = vpack.c.b16 %v1394, %v1375
    %v1851 = vpack.c.b16 %v1395, %v1376
    %v1852 = vpack.c.b16 %v1396, %v1377
    %v1853 = vpack.c.b16 %v1397, %v1378
    %v1854 = vpack.c.b16 %v1398, %v1379
    %v1855 = vpack.c.b16 %v1399, %v1380
    %v1856 = vpack.c.b16 %v1400, %v1381
    %v1857 = vpack.c.b16 %v1401, %v1382
    %v1858 = vpack.c.b16 %v1402, %v1383
    %v1859 = vpack.c.b16 %v1403, %v1384
    %v1860 = vpack.c.b16 %v1404, %v1385
    %v1861 = vpack.c.b16 %v1405, %v1386
    %v1862 = vpack.c.b16 %v1406, %v1387
    %v1863 = vpack.c.b16 %v1407, %v1388
    %v1864 = vpack.c.b16 %v1427, %v1408
    %v1865 = vpack.c.b16 %v1428, %v1409
    %v1866 = vpack.c.b16 %v1429, %v1410
    %v1867 = vpack.c.b16 %v1430, %v1411
    %v1868 = vpack.c.b16 %v1431, %v1412
    %v1869 = vpack.c.b16 %v1432, %v1413
    %v1870 = vpack.c.b16 %v1433, %v1414
    %v1871 = vpack.c.b16 %v1434, %v1415
    %v1872 = vpack.c.b16 %v1435, %v1416
    %v1873 = vpack.c.b16 %v1436, %v1417
    %v1874 = vpack.c.b16 %v1437, %v1418
    %v1875 = vpack.c.b16 %v1438, %v1419
    %v1876 = vpack.c.b16 %v1439, %v1420
    %v1877 = vpack.c.b16 %v1440, %v1421
    %v1878 = vpack.c.b16 %v1441, %v1422
    %v1879 = vpack.c.b16 %v1442, %v1423
    %v1880 = vpack.c.b16 %v1443, %v1424
    %v1881 = vpack.c.b16 %v1444, %v1425
    %v1882 = vpack.c.b16 %v1445, %v1426
    %v1883 = vpack.c.b16 %v1465, %v1446
    %v1884 = vpack.c.b16 %v1466, %v1447
    %v1885 = vpack.c.b16 %v1467, %v1448
    %v1886 = vpack.c.b16 %v1468, %v1449
    %v1887 = vpack.c.b16 %v1469, %v1450
    %v1888 = vpack.c.b16 %v1470, %v1451
    %v1889 = vpack.c.b16 %v1471, %v1452
    %v1890 = vpack.c.b16 %v1472, %v1453
    %v1891 = vpack.c.b16 %v1473, %v1454
    %v1892 = vpack.c.b16 %v1474, %v1455
    %v1893 = vpack.c.b16 %v1475, %v1456
    %v1894 = vpack.c.b16 %v1476, %v1457
    %v1895 = vpack.c.b16 %v1477, %v1458
    %v1896 = vpack.c.b16 %v1478, %v1459
    %v1897 = vpack.c.b16 %v1479, %v1460
    %v1898 = vpack.c.b16 %v1480, %v1461
    %v1899 = vpack.c.b16 %v1481, %v1462
    %v1900 = vpack.c.b16 %v1482, %v1463
    %v1901 = vpack.c.b16 %v1483, %v1464
    %v1902 = vpack.c.b16 %v1503, %v1484
    %v1903 = vpack.c.b16 %v1504, %v1485
    %v1904 = vpack.c.b16 %v1505, %v1486
    %v1905 = vpack.c.b16 %v1506, %v1487
    %v1906 = vpack.c.b16 %v1507, %v1488
    %v1907 = vpack.c.b16 %v1508, %v1489
    %v1908 = vpack.c.b16 %v1509, %v1490
    %v1909 = vpack.c.b16 %v1510, %v1491
    %v1910 = vpack.c.b16 %v1511, %v1492
    %v1911 = vpack.c.b16 %v1512, %v1493
    %v1912 = vpack.c.b16 %v1513, %v1494
    %v1913 = vpack.c.b16 %v1514, %v1495
    %v1914 = vpack.c.b16 %v1515, %v1496
    %v1915 = vpack.c.b16 %v1516, %v1497
    %v1916 = vpack.c.b16 %v1517, %v1498
    %v1917 = vpack.c.b16 %v1518, %v1499
    %v1918 = vpack.c.b16 %v1519, %v1500
    %v1919 = vpack.c.b16 %v1520, %v1501
    %v1920 = vpack.c.b16 %v1521, %v1502
    %v1921 = vpack.c.b16 %v1541, %v1522
    %v1922 = vpack.c.b16 %v1542, %v1523
    %v1923 = vpack.c.b16 %v1543, %v1524
    %v1924 = vpack.c.b16 %v1544, %v1525
    %v1925 = vpack.c.b16 %v1545, %v1526
    %v1926 = vpack.c.b16 %v1546, %v1527
    %v1927 = vpack.c.b16 %v1547, %v1528
    %v1928 = vpack.c.b16 %v1548, %v1529
    %v1929 = vpack.c.b16 %v1549, %v1530
    %v1930 = vpack.c.b16 %v1550, %v1531
    %v1931 = vpack.c.b16 %v1551, %v1532
    %v1932 = vpack.c.b16 %v1552, %v1533
    %v1933 = vpack.c.b16 %v1553, %v1534
    %v1934 = vpack.c.b16 %v1554, %v1535
    %v1935 = vpack.c.b16 %v1555, %v1536
    %v1936 = vpack.c.b16 %v1556, %v1537
    %v1937 = vpack.c.b16 %v1557, %v1538
    %v1938 = vpack.c.b16 %v1558, %v1539
    %v1939 = vpack.c.b16 %v1559, %v1540
    %v1940 = vpack.c.b16 %v1579, %v1560
    %v1941 = vpack.c.b16 %v1580, %v1561
    %v1942 = vpack.c.b16 %v1581, %v1562
    %v1943 = vpack.c.b16 %v1582, %v1563
    %v1944 = vpack.c.b16 %v1583, %v1564
    %v1945 = vpack.c.b16 %v1584, %v1565
    %v1946 = vpack.c.b16 %v1585, %v1566
    %v1947 = vpack.c.b16 %v1586, %v1567
    %v1948 = vpack.c.b16 %v1587, %v1568
    %v1949 = vpack.c.b16 %v1588, %v1569
    %v1950 = vpack.c.b16 %v1589, %v1570
    %v1951 = vpack.c.b16 %v1590, %v1571
    %v1952 = vpack.c.b16 %v1591, %v1572
    %v1953 = vpack.c.b16 %v1592, %v1573
    %v1954 = vpack.c.b16 %v1593, %v1574
    %v1955 = vpack.c.b16 %v1594, %v1575
    %v1956 = vpack.c.b16 %v1595, %v1576
    %v1957 = vpack.c.b16 %v1596, %v1577
    %v1958 = vpack.c.b16 %v1597, %v1578
    %v1959 = vpack.c.b16 %v1617, %v1598
    %v1960 = vpack.c.b16 %v1618, %v1599
    %v1961 = vpack.c.b16 %v1619, %v1600
    %v1962 = vpack.c.b16 %v1620, %v1601
    %v1963 = vpack.c.b16 %v1621, %v1602
    %v1964 = vpack.c.b16 %v1622, %v1603
    %v1965 = vpack.c.b16 %v1623, %v1604
    %v1966 = vpack.c.b16 %v1624, %v1605
    %v1967 = vpack.c.b16 %v1625, %v1606
    %v1968 = vpack.c.b16 %v1626, %v1607
    %v1969 = vpack.c.b16 %v1627, %v1608
    %v1970 = vpack.c.b16 %v1628, %v1609
    %v1971 = vpack.c.b16 %v1629, %v1610
    %v1972 = vpack.c.b16 %v1630, %v1611
    %v1973 = vpack.c.b16 %v1631, %v1612
    %v1974 = vpack.c.b16 %v1632, %v1613
    %v1975 = vpack.c.b16 %v1633, %v1614
    %v1976 = vpack.c.b16 %v1634, %v1615
    %v1977 = vpack.c.b16 %v1635, %v1616
    %v1978 = vpack.c.b16 %v1655, %v1636
    %v1979 = vpack.c.b16 %v1656, %v1637
    %v1980 = vpack.c.b16 %v1657, %v1638
    %v1981 = vpack.c.b16 %v1658, %v1639
    %v1982 = vpack.c.b16 %v1659, %v1640
    %v1983 = vpack.c.b16 %v1660, %v1641
    %v1984 = vpack.c.b16 %v1661, %v1642
    %v1985 = vpack.c.b16 %v1662, %v1643
    %v1986 = vpack.c.b16 %v1663, %v1644
    %v1987 = vpack.c.b16 %v1664, %v1645
    %v1988 = vpack.c.b16 %v1665, %v1646
    %v1989 = vpack.c.b16 %v1666, %v1647
    %v1990 = vpack.c.b16 %v1667, %v1648
    %v1991 = vpack.c.b16 %v1668, %v1649
    %v1992 = vpack.c.b16 %v1669, %v1650
    %v1993 = vpack.c.b16 %v1670, %v1651
    %v1994 = vpack.c.b16 %v1671, %v1652
    %v1995 = vpack.c.b16 %v1672, %v1653
    %v1996 = vpack.c.b16 %v1673, %v1654
    %v1997 = vpack.c.b16 %v1693, %v1674
    %v1998 = vpack.c.b16 %v1694, %v1675
    %v1999 = vpack.c.b16 %v1695, %v1676
    %v2000 = vpack.c.b16 %v1696, %v1677
    %v2001 = vpack.c.b16 %v1697, %v1678
    %v2002 = vpack.c.b16 %v1698, %v1679
    %v2003 = vpack.c.b16 %v1699, %v1680
    %v2004 = vpack.c.b16 %v1700, %v1681
    %v2005 = vpack.c.b16 %v1701, %v1682
    %v2006 = vpack.c.b16 %v1702, %v1683
    %v2007 = vpack.c.b16 %v1703, %v1684
    %v2008 = vpack.c.b16 %v1704, %v1685
    %v2009 = vpack.c.b16 %v1705, %v1686
    %v2010 = vpack.c.b16 %v1706, %v1687
    %v2011 = vpack.c.b16 %v1707, %v1688
    %v2012 = vpack.c.b16 %v1708, %v1689
    %v2013 = vpack.c.b16 %v1709, %v1690
    %v2014 = vpack.c.b16 %v1710, %v1691
    %v2015 = vpack.c.b16 %v1711, %v1692
    %2320 = vmatprep.subr.bf16.mxu0 %v1846
    %2321 = vmatpush1.bf16.msra.mxu0 %v1845
    %2322 = vmatprep.subr.bf16.mxu0 %v1827
    %2323 = vmatpush1.bf16.msra.mxu0 %v1826
    %2324 = vmatprep.subr.bf16.mxu0 %v1808
    %2325 = vmatpush1.bf16.msra.mxu0 %v1807
    %2326 = vmatprep.subr.bf16.mxu0 %v1789
    %2327 = vmatpush1.bf16.msra.mxu0 %v1788
    %2328 = vmatprep.subr.bf16.mxu0 %v1770
    %2329 = vmatpush1.bf16.msra.mxu0 %v1769
    %2330 = vmatprep.subr.bf16.mxu0 %v1751
    %2331 = vmatpush1.bf16.msra.mxu0 %v1750
    %2332 = vmatprep.subr.bf16.mxu0 %v1732
    %2333 = vmatpush1.bf16.msra.mxu0 %v1731
    %2334 = vmatprep.subr.bf16.mxu0 %v1713
    %2335 = vmatpush1.bf16.msra.mxu0 %v1712
    %2336 = vmatprep.subr.bf16.mxu0 %v1998
    %2337 = vmatpush2.bf16.msra.mxu0 %v1997
    %2338 = vmatprep.subr.bf16.mxu0 %v1979
    %2339 = vmatpush2.bf16.msra.mxu0 %v1978
    %2340 = vmatprep.subr.bf16.mxu0 %v1960
    %2341 = vmatpush2.bf16.msra.mxu0 %v1959
    %2342 = vmatprep.subr.bf16.mxu0 %v1941
    %2343 = vmatpush2.bf16.msra.mxu0 %v1940
    %2344 = vmatprep.subr.bf16.mxu0 %v1922
    %2345 = vmatpush2.bf16.msra.mxu0 %v1921
    %2346 = vmatprep.subr.bf16.mxu0 %v1903
    %2347 = vmatpush2.bf16.msra.mxu0 %v1902
    %2348 = vmatprep.subr.bf16.mxu0 %v1884
    %2349 = vmatpush2.bf16.msra.mxu0 %v1883
    %2350 = vmatprep.subr.bf16.mxu0 %v1865
    %2351 = vmatpush2.bf16.msra.mxu0 %v1864
    %2352 = vmatprep.mubr.bf16.mxu0 %v362
    %2353 = vmatmul.mubr.bf16.gmra.mxu0 %v361
    %v2354 = vpop.f32.mrf.mxu0
    %v2355 = vadd.f32 %v692, %v2354
    %v2356 = vpop.f32.mrf.mxu0
    %v2357 = vadd.f32 %v696, %v2356
    %v2358 = vpop.f32.mrf.mxu0
    %v2359 = vpop.f32.mrf.mxu0
    %2360 = vdwg.mxu0
    %2361 = vmatprep.subr.bf16.mxu0 %v1848
    %2362 = vmatpush1.bf16.msra.mxu0 %v1847
    %2363 = vmatprep.subr.bf16.mxu0 %v1829
    %2364 = vmatpush1.bf16.msra.mxu0 %v1828
    %2365 = vmatprep.subr.bf16.mxu0 %v1810
    %2366 = vmatpush1.bf16.msra.mxu0 %v1809
    %2367 = vmatprep.subr.bf16.mxu0 %v1791
    %2368 = vmatpush1.bf16.msra.mxu0 %v1790
    %2369 = vmatprep.subr.bf16.mxu0 %v1772
    %2370 = vmatpush1.bf16.msra.mxu0 %v1771
    %2371 = vmatprep.subr.bf16.mxu0 %v1753
    %2372 = vmatpush1.bf16.msra.mxu0 %v1752
    %2373 = vmatprep.subr.bf16.mxu0 %v1734
    %2374 = vmatpush1.bf16.msra.mxu0 %v1733
    %2375 = vmatprep.subr.bf16.mxu0 %v1715
    %2376 = vmatpush1.bf16.msra.mxu0 %v1714
    %2377 = vmatprep.subr.bf16.mxu0 %v2000
    %2378 = vmatpush2.bf16.msra.mxu0 %v1999
    %2379 = vmatprep.subr.bf16.mxu0 %v1981
    %2380 = vmatpush2.bf16.msra.mxu0 %v1980
    %2381 = vmatprep.subr.bf16.mxu0 %v1962
    %2382 = vmatpush2.bf16.msra.mxu0 %v1961
    %2383 = vmatprep.subr.bf16.mxu0 %v1943
    %2384 = vmatpush2.bf16.msra.mxu0 %v1942
    %2385 = vmatprep.subr.bf16.mxu0 %v1924
    %2386 = vmatpush2.bf16.msra.mxu0 %v1923
    %2387 = vmatprep.subr.bf16.mxu0 %v1905
    %2388 = vmatpush2.bf16.msra.mxu0 %v1904
    %2389 = vmatprep.subr.bf16.mxu0 %v1886
    %2390 = vmatpush2.bf16.msra.mxu0 %v1885
    %2391 = vmatprep.subr.bf16.mxu0 %v1867
    %2392 = vmatpush2.bf16.msra.mxu0 %v1866
    %2393 = vmatprep.mubr.bf16.mxu0 %v362
    %2394 = vmatmul.mubr.bf16.gmra.mxu0 %v361
    %v2395 = vpop.f32.mrf.mxu0
    %v2396 = vadd.f32 %v700, %v2395
    %v2397 = vpop.f32.mrf.mxu0
    %v2398 = vadd.f32 %v704, %v2397
    %v2399 = vpop.f32.mrf.mxu0
    %v2400 = vpop.f32.mrf.mxu0
    %2401 = vdwg.mxu0
    %2402 = vmatprep.subr.bf16.mxu0 %v1850
    %2403 = vmatpush1.bf16.msra.mxu0 %v1849
    %2404 = vmatprep.subr.bf16.mxu0 %v1831
    %2405 = vmatpush1.bf16.msra.mxu0 %v1830
    %2406 = vmatprep.subr.bf16.mxu0 %v1812
    %2407 = vmatpush1.bf16.msra.mxu0 %v1811
    %2408 = vmatprep.subr.bf16.mxu0 %v1793
    %2409 = vmatpush1.bf16.msra.mxu0 %v1792
    %2410 = vmatprep.subr.bf16.mxu0 %v1774
    %2411 = vmatpush1.bf16.msra.mxu0 %v1773
    %2412 = vmatprep.subr.bf16.mxu0 %v1755
    %2413 = vmatpush1.bf16.msra.mxu0 %v1754
    %2414 = vmatprep.subr.bf16.mxu0 %v1736
    %2415 = vmatpush1.bf16.msra.mxu0 %v1735
    %2416 = vmatprep.subr.bf16.mxu0 %v1717
    %2417 = vmatpush1.bf16.msra.mxu0 %v1716
    %2418 = vmatprep.subr.bf16.mxu0 %v2002
    %2419 = vmatpush2.bf16.msra.mxu0 %v2001
    %2420 = vmatprep.subr.bf16.mxu0 %v1983
    %2421 = vmatpush2.bf16.msra.mxu0 %v1982
    %2422 = vmatprep.subr.bf16.mxu0 %v1964
    %2423 = vmatpush2.bf16.msra.mxu0 %v1963
    %2424 = vmatprep.subr.bf16.mxu0 %v1945
    %2425 = vmatpush2.bf16.msra.mxu0 %v1944
    %2426 = vmatprep.subr.bf16.mxu0 %v1926
    %2427 = vmatpush2.bf16.msra.mxu0 %v1925
    %2428 = vmatprep.subr.bf16.mxu0 %v1907
    %2429 = vmatpush2.bf16.msra.mxu0 %v1906
    %2430 = vmatprep.subr.bf16.mxu0 %v1888
    %2431 = vmatpush2.bf16.msra.mxu0 %v1887
    %2432 = vmatprep.subr.bf16.mxu0 %v1869
    %2433 = vmatpush2.bf16.msra.mxu0 %v1868
    %2434 = vmatprep.mubr.bf16.mxu0 %v362
    %2435 = vmatmul.mubr.bf16.gmra.mxu0 %v361
    %v2436 = vpop.f32.mrf.mxu0
    %v2437 = vadd.f32 %v708, %v2436
    %v2438 = vpop.f32.mrf.mxu0
    %v2439 = vadd.f32 %v712, %v2438
    %v2440 = vpop.f32.mrf.mxu0
    %v2441 = vpop.f32.mrf.mxu0
    %2442 = vdwg.mxu0
    %2443 = vmatprep.subr.bf16.mxu0 %v1852
    %2444 = vmatpush1.bf16.msra.mxu0 %v1851
    %2445 = vmatprep.subr.bf16.mxu0 %v1833
    %2446 = vmatpush1.bf16.msra.mxu0 %v1832
    %2447 = vmatprep.subr.bf16.mxu0 %v1814
    %2448 = vmatpush1.bf16.msra.mxu0 %v1813
    %2449 = vmatprep.subr.bf16.mxu0 %v1795
    %2450 = vmatpush1.bf16.msra.mxu0 %v1794
    %2451 = vmatprep.subr.bf16.mxu0 %v1776
    %2452 = vmatpush1.bf16.msra.mxu0 %v1775
    %2453 = vmatprep.subr.bf16.mxu0 %v1757
    %2454 = vmatpush1.bf16.msra.mxu0 %v1756
    %2455 = vmatprep.subr.bf16.mxu0 %v1738
    %2456 = vmatpush1.bf16.msra.mxu0 %v1737
    %2457 = vmatprep.subr.bf16.mxu0 %v1719
    %2458 = vmatpush1.bf16.msra.mxu0 %v1718
    %2459 = vmatprep.subr.bf16.mxu0 %v2004
    %2460 = vmatpush2.bf16.msra.mxu0 %v2003
    %2461 = vmatprep.subr.bf16.mxu0 %v1985
    %2462 = vmatpush2.bf16.msra.mxu0 %v1984
    %2463 = vmatprep.subr.bf16.mxu0 %v1966
    %2464 = vmatpush2.bf16.msra.mxu0 %v1965
    %2465 = vmatprep.subr.bf16.mxu0 %v1947
    %2466 = vmatpush2.bf16.msra.mxu0 %v1946
    %2467 = vmatprep.subr.bf16.mxu0 %v1928
    %2468 = vmatpush2.bf16.msra.mxu0 %v1927
    %2469 = vmatprep.subr.bf16.mxu0 %v1909
    %2470 = vmatpush2.bf16.msra.mxu0 %v1908
    %2471 = vmatprep.subr.bf16.mxu0 %v1890
    %2472 = vmatpush2.bf16.msra.mxu0 %v1889
    %2473 = vmatprep.subr.bf16.mxu0 %v1871
    %2474 = vmatpush2.bf16.msra.mxu0 %v1870
    %2475 = vmatprep.mubr.bf16.mxu0 %v362
    %2476 = vmatmul.mubr.bf16.gmra.mxu0 %v361
    %v2477 = vpop.f32.mrf.mxu0
    %v2478 = vadd.f32 %v716, %v2477
    %v2479 = vpop.f32.mrf.mxu0
    %v2480 = vadd.f32 %v720, %v2479
    %v2481 = vpop.f32.mrf.mxu0
    %v2482 = vpop.f32.mrf.mxu0
    %2483 = vdwg.mxu0
    %2484 = vmatprep.subr.bf16.mxu0 %v1854
    %2485 = vmatpush1.bf16.msra.mxu0 %v1853
    %2486 = vmatprep.subr.bf16.mxu0 %v1835
    %2487 = vmatpush1.bf16.msra.mxu0 %v1834
    %2488 = vmatprep.subr.bf16.mxu0 %v1816
    %2489 = vmatpush1.bf16.msra.mxu0 %v1815
    %2490 = vmatprep.subr.bf16.mxu0 %v1797
    %2491 = vmatpush1.bf16.msra.mxu0 %v1796
    %2492 = vmatprep.subr.bf16.mxu0 %v1778
    %2493 = vmatpush1.bf16.msra.mxu0 %v1777
    %2494 = vmatprep.subr.bf16.mxu0 %v1759
    %2495 = vmatpush1.bf16.msra.mxu0 %v1758
    %2496 = vmatprep.subr.bf16.mxu0 %v1740
    %2497 = vmatpush1.bf16.msra.mxu0 %v1739
    %2498 = vmatprep.subr.bf16.mxu0 %v1721
    %2499 = vmatpush1.bf16.msra.mxu0 %v1720
    %2500 = vmatprep.subr.bf16.mxu0 %v2006
    %2501 = vmatpush2.bf16.msra.mxu0 %v2005
    %2502 = vmatprep.subr.bf16.mxu0 %v1987
    %2503 = vmatpush2.bf16.msra.mxu0 %v1986
    %2504 = vmatprep.subr.bf16.mxu0 %v1968
    %2505 = vmatpush2.bf16.msra.mxu0 %v1967
    %2506 = vmatprep.subr.bf16.mxu0 %v1949
    %2507 = vmatpush2.bf16.msra.mxu0 %v1948
    %2508 = vmatprep.subr.bf16.mxu0 %v1930
    %2509 = vmatpush2.bf16.msra.mxu0 %v1929
    %2510 = vmatprep.subr.bf16.mxu0 %v1911
    %2511 = vmatpush2.bf16.msra.mxu0 %v1910
    %2512 = vmatprep.subr.bf16.mxu0 %v1892
    %2513 = vmatpush2.bf16.msra.mxu0 %v1891
    %2514 = vmatprep.subr.bf16.mxu0 %v1873
    %2515 = vmatpush2.bf16.msra.mxu0 %v1872
    %2516 = vmatprep.mubr.bf16.mxu0 %v362
    %2517 = vmatmul.mubr.bf16.gmra.mxu0 %v361
    %v2518 = vpop.f32.mrf.mxu0
    %v2519 = vadd.f32 %v724, %v2518
    %v2520 = vpop.f32.mrf.mxu0
    %v2521 = vadd.f32 %v728, %v2520
    %v2522 = vpop.f32.mrf.mxu0
    %v2523 = vpop.f32.mrf.mxu0
    %2524 = vdwg.mxu0
    %2525 = vmatprep.subr.bf16.mxu0 %v1856
    %2526 = vmatpush1.bf16.msra.mxu0 %v1855
    %2527 = vmatprep.subr.bf16.mxu0 %v1837
    %2528 = vmatpush1.bf16.msra.mxu0 %v1836
    %2529 = vmatprep.subr.bf16.mxu0 %v1818
    %2530 = vmatpush1.bf16.msra.mxu0 %v1817
    %2531 = vmatprep.subr.bf16.mxu0 %v1799
    %2532 = vmatpush1.bf16.msra.mxu0 %v1798
    %2533 = vmatprep.subr.bf16.mxu0 %v1780
    %2534 = vmatpush1.bf16.msra.mxu0 %v1779
    %2535 = vmatprep.subr.bf16.mxu0 %v1761
    %2536 = vmatpush1.bf16.msra.mxu0 %v1760
    %2537 = vmatprep.subr.bf16.mxu0 %v1742
    %2538 = vmatpush1.bf16.msra.mxu0 %v1741
    %2539 = vmatprep.subr.bf16.mxu0 %v1723
    %2540 = vmatpush1.bf16.msra.mxu0 %v1722
    %2541 = vmatprep.subr.bf16.mxu0 %v2008
    %2542 = vmatpush2.bf16.msra.mxu0 %v2007
    %2543 = vmatprep.subr.bf16.mxu0 %v1989
    %2544 = vmatpush2.bf16.msra.mxu0 %v1988
    %2545 = vmatprep.subr.bf16.mxu0 %v1970
    %2546 = vmatpush2.bf16.msra.mxu0 %v1969
    %2547 = vmatprep.subr.bf16.mxu0 %v1951
    %2548 = vmatpush2.bf16.msra.mxu0 %v1950
    %2549 = vmatprep.subr.bf16.mxu0 %v1932
    %2550 = vmatpush2.bf16.msra.mxu0 %v1931
    %2551 = vmatprep.subr.bf16.mxu0 %v1913
    %2552 = vmatpush2.bf16.msra.mxu0 %v1912
    %2553 = vmatprep.subr.bf16.mxu0 %v1894
    %2554 = vmatpush2.bf16.msra.mxu0 %v1893
    %2555 = vmatprep.subr.bf16.mxu0 %v1875
    %2556 = vmatpush2.bf16.msra.mxu0 %v1874
    %2557 = vmatprep.mubr.bf16.mxu0 %v362
    %2558 = vmatmul.mubr.bf16.gmra.mxu0 %v361
    %v2559 = vpop.f32.mrf.mxu0
    %v2560 = vadd.f32 %v732, %v2559
    %v2561 = vpop.f32.mrf.mxu0
    %v2562 = vadd.f32 %v736, %v2561
    %v2563 = vpop.f32.mrf.mxu0
    %v2564 = vpop.f32.mrf.mxu0
    %2565 = vdwg.mxu0
    %2566 = vmatprep.subr.bf16.mxu0 %v1858
    %2567 = vmatpush1.bf16.msra.mxu0 %v1857
    %2568 = vmatprep.subr.bf16.mxu0 %v1839
    %2569 = vmatpush1.bf16.msra.mxu0 %v1838
    %2570 = vmatprep.subr.bf16.mxu0 %v1820
    %2571 = vmatpush1.bf16.msra.mxu0 %v1819
    %2572 = vmatprep.subr.bf16.mxu0 %v1801
    %2573 = vmatpush1.bf16.msra.mxu0 %v1800
    %2574 = vmatprep.subr.bf16.mxu0 %v1782
    %2575 = vmatpush1.bf16.msra.mxu0 %v1781
    %2576 = vmatprep.subr.bf16.mxu0 %v1763
    %2577 = vmatpush1.bf16.msra.mxu0 %v1762
    %2578 = vmatprep.subr.bf16.mxu0 %v1744
    %2579 = vmatpush1.bf16.msra.mxu0 %v1743
    %2580 = vmatprep.subr.bf16.mxu0 %v1725
    %2581 = vmatpush1.bf16.msra.mxu0 %v1724
    %2582 = vmatprep.subr.bf16.mxu0 %v2010
    %2583 = vmatpush2.bf16.msra.mxu0 %v2009
    %2584 = vmatprep.subr.bf16.mxu0 %v1991
    %2585 = vmatpush2.bf16.msra.mxu0 %v1990
    %2586 = vmatprep.subr.bf16.mxu0 %v1972
    %2587 = vmatpush2.bf16.msra.mxu0 %v1971
    %2588 = vmatprep.subr.bf16.mxu0 %v1953
    %2589 = vmatpush2.bf16.msra.mxu0 %v1952
    %2590 = vmatprep.subr.bf16.mxu0 %v1934
    %2591 = vmatpush2.bf16.msra.mxu0 %v1933
    %2592 = vmatprep.subr.bf16.mxu0 %v1915
    %2593 = vmatpush2.bf16.msra.mxu0 %v1914
    %2594 = vmatprep.subr.bf16.mxu0 %v1896
    %2595 = vmatpush2.bf16.msra.mxu0 %v1895
    %2596 = vmatprep.subr.bf16.mxu0 %v1877
    %2597 = vmatpush2.bf16.msra.mxu0 %v1876
    %2598 = vmatprep.mubr.bf16.mxu0 %v362
    %2599 = vmatmul.mubr.bf16.gmra.mxu0 %v361
    %v2600 = vpop.f32.mrf.mxu0
    %v2601 = vadd.f32 %v740, %v2600
    %v2602 = vpop.f32.mrf.mxu0
    %v2603 = vadd.f32 %v744, %v2602
    %v2604 = vpop.f32.mrf.mxu0
    %v2605 = vpop.f32.mrf.mxu0
    %2606 = vdwg.mxu0
    %2607 = vmatprep.subr.bf16.mxu0 %v1860
    %2608 = vmatpush1.bf16.msra.mxu0 %v1859
    %2609 = vmatprep.subr.bf16.mxu0 %v1841
    %2610 = vmatpush1.bf16.msra.mxu0 %v1840
    %2611 = vmatprep.subr.bf16.mxu0 %v1822
    %2612 = vmatpush1.bf16.msra.mxu0 %v1821
    %2613 = vmatprep.subr.bf16.mxu0 %v1803
    %2614 = vmatpush1.bf16.msra.mxu0 %v1802
    %2615 = vmatprep.subr.bf16.mxu0 %v1784
    %2616 = vmatpush1.bf16.msra.mxu0 %v1783
    %2617 = vmatprep.subr.bf16.mxu0 %v1765
    %2618 = vmatpush1.bf16.msra.mxu0 %v1764
    %2619 = vmatprep.subr.bf16.mxu0 %v1746
    %2620 = vmatpush1.bf16.msra.mxu0 %v1745
    %2621 = vmatprep.subr.bf16.mxu0 %v1727
    %2622 = vmatpush1.bf16.msra.mxu0 %v1726
    %2623 = vmatprep.subr.bf16.mxu0 %v2012
    %2624 = vmatpush2.bf16.msra.mxu0 %v2011
    %2625 = vmatprep.subr.bf16.mxu0 %v1993
    %2626 = vmatpush2.bf16.msra.mxu0 %v1992
    %2627 = vmatprep.subr.bf16.mxu0 %v1974
    %2628 = vmatpush2.bf16.msra.mxu0 %v1973
    %2629 = vmatprep.subr.bf16.mxu0 %v1955
    %2630 = vmatpush2.bf16.msra.mxu0 %v1954
    %2631 = vmatprep.subr.bf16.mxu0 %v1936
    %2632 = vmatpush2.bf16.msra.mxu0 %v1935
    %2633 = vmatprep.subr.bf16.mxu0 %v1917
    %2634 = vmatpush2.bf16.msra.mxu0 %v1916
    %2635 = vmatprep.subr.bf16.mxu0 %v1898
    %2636 = vmatpush2.bf16.msra.mxu0 %v1897
    %2637 = vmatprep.subr.bf16.mxu0 %v1879
    %2638 = vmatpush2.bf16.msra.mxu0 %v1878
    %2639 = vmatprep.mubr.bf16.mxu0 %v362
    %2640 = vmatmul.mubr.bf16.gmra.mxu0 %v361
    %v2641 = vpop.f32.mrf.mxu0
    %v2642 = vadd.f32 %v748, %v2641
    %v2643 = vpop.f32.mrf.mxu0
    %v2644 = vadd.f32 %v752, %v2643
    %v2645 = vpop.f32.mrf.mxu0
    %v2646 = vpop.f32.mrf.mxu0
    %2647 = vdwg.mxu0
    %2648 = vmatprep.subr.bf16.mxu0 %v1862
    %2649 = vmatpush1.bf16.msra.mxu0 %v1861
    %2650 = vmatprep.subr.bf16.mxu0 %v1843
    %2651 = vmatpush1.bf16.msra.mxu0 %v1842
    %2652 = vmatprep.subr.bf16.mxu0 %v1824
    %2653 = vmatpush1.bf16.msra.mxu0 %v1823
    %2654 = vmatprep.subr.bf16.mxu0 %v1805
    %2655 = vmatpush1.bf16.msra.mxu0 %v1804
    %2656 = vmatprep.subr.bf16.mxu0 %v1786
    %2657 = vmatpush1.bf16.msra.mxu0 %v1785
    %2658 = vmatprep.subr.bf16.mxu0 %v1767
    %2659 = vmatpush1.bf16.msra.mxu0 %v1766
    %2660 = vmatprep.subr.bf16.mxu0 %v1748
    %2661 = vmatpush1.bf16.msra.mxu0 %v1747
    %2662 = vmatprep.subr.bf16.mxu0 %v1729
    %2663 = vmatpush1.bf16.msra.mxu0 %v1728
    %2664 = vmatprep.subr.bf16.mxu0 %v2014
    %2665 = vmatpush2.bf16.msra.mxu0 %v2013
    %2666 = vmatprep.subr.bf16.mxu0 %v1995
    %2667 = vmatpush2.bf16.msra.mxu0 %v1994
    %2668 = vmatprep.subr.bf16.mxu0 %v1976
    %2669 = vmatpush2.bf16.msra.mxu0 %v1975
    %2670 = vmatprep.subr.bf16.mxu0 %v1957
    %2671 = vmatpush2.bf16.msra.mxu0 %v1956
    %2672 = vmatprep.subr.bf16.mxu0 %v1938
    %2673 = vmatpush2.bf16.msra.mxu0 %v1937
    %2674 = vmatprep.subr.bf16.mxu0 %v1919
    %2675 = vmatpush2.bf16.msra.mxu0 %v1918
    %2676 = vmatprep.subr.bf16.mxu0 %v1900
    %2677 = vmatpush2.bf16.msra.mxu0 %v1899
    %2678 = vmatprep.subr.bf16.mxu0 %v1881
    %2679 = vmatpush2.bf16.msra.mxu0 %v1880
    %2680 = vmatprep.mubr.bf16.mxu0 %v362
    %2681 = vmatmul.mubr.bf16.gmra.mxu0 %v361
    %v2682 = vpop.f32.mrf.mxu0
    %v2683 = vadd.f32 %v756, %v2682
    %v2684 = vpop.f32.mrf.mxu0
    %v2685 = vadd.f32 %v760, %v2684
    %v2686 = vpop.f32.mrf.mxu0
    %v2687 = vpop.f32.mrf.mxu0
    %2688 = vdwg.mxu0
    %2689 = vmatprep.subr.bf16.mxu0 0
    %2690 = vmatpush1.bf16.msra.mxu0 %v1863
    %2691 = vmatprep.subr.bf16.mxu0 0
    %2692 = vmatpush1.bf16.msra.mxu0 %v1844
    %2693 = vmatprep.subr.bf16.mxu0 0
    %2694 = vmatpush1.bf16.msra.mxu0 %v1825
    %2695 = vmatprep.subr.bf16.mxu0 0
    %2696 = vmatpush1.bf16.msra.mxu0 %v1806
    %2697 = vmatprep.subr.bf16.mxu0 0
    %2698 = vmatpush1.bf16.msra.mxu0 %v1787
    %2699 = vmatprep.subr.bf16.mxu0 0
    %2700 = vmatpush1.bf16.msra.mxu0 %v1768
    %2701 = vmatprep.subr.bf16.mxu0 0
    %2702 = vmatpush1.bf16.msra.mxu0 %v1749
    %2703 = vmatprep.subr.bf16.mxu0 0
    %2704 = vmatpush1.bf16.msra.mxu0 %v1730
    %2705 = vmatprep.subr.bf16.mxu0 0
    %2706 = vmatpush2.bf16.msra.mxu0 %v2015
    %2707 = vmatprep.subr.bf16.mxu0 0
    %2708 = vmatpush2.bf16.msra.mxu0 %v1996
    %2709 = vmatprep.subr.bf16.mxu0 0
    %2710 = vmatpush2.bf16.msra.mxu0 %v1977
    %2711 = vmatprep.subr.bf16.mxu0 0
    %2712 = vmatpush2.bf16.msra.mxu0 %v1958
    %2713 = vmatprep.subr.bf16.mxu0 0
    %2714 = vmatpush2.bf16.msra.mxu0 %v1939
    %2715 = vmatprep.subr.bf16.mxu0 0
    %2716 = vmatpush2.bf16.msra.mxu0 %v1920
    %2717 = vmatprep.subr.bf16.mxu0 0
    %2718 = vmatpush2.bf16.msra.mxu0 %v1901
    %2719 = vmatprep.subr.bf16.mxu0 0
    %2720 = vmatpush2.bf16.msra.mxu0 %v1882
    %2721 = vmatprep.mubr.bf16.mxu0 %v362
    %2722 = vmatmul.mubr.bf16.gmra.mxu0 %v361
    %v2723 = vpop.f32.mrf.mxu0
    %v2724 = vadd.f32 %v764, %v2723
    %v2725 = vpop.f32.mrf.mxu0
    %v2726 = vpop.f32.mrf.mxu0
    %v2727 = vpop.f32.mrf.mxu0
    %2728 = vdwg.mxu0
    %v2729 = vtanh.pop %v2355
    %v2730 = vtanh.pop %v2357
    %v2731 = vtanh.pop %v2396
    %v2732 = vtanh.pop %v2398
    %v2733 = vtanh.pop %v2437
    %v2734 = vtanh.pop %v2439
    %v2735 = vtanh.pop %v2478
    %v2736 = vtanh.pop %v2480
    %v2737 = vtanh.pop %v2519
    %v2738 = vtanh.pop %v2521
    %v2739 = vtanh.pop %v2560
    %v2740 = vtanh.pop %v2562
    %v2741 = vtanh.pop %v2601
    %v2742 = vtanh.pop %v2603
    %v2743 = vtanh.pop %v2642
    %v2744 = vtanh.pop %v2644
    %v2745 = vtanh.pop %v2683
    %v2746 = vtanh.pop %v2685
    %v2747 = vtanh.pop %v2724
    %2748 = vst [vmem:[#allocation2] sm:$0xff] %v2729
    %2749 = vst [vmem:[#allocation2 + $0x8] sm:$0xff] %v2730
    %2750 = vst [vmem:[#allocation2 + $0x10] sm:$0xff] %v2731
    %2751 = vst [vmem:[#allocation2 + $0x18] sm:$0xff] %v2732
    %2752 = vst [vmem:[#allocation2 + $0x20] sm:$0xff] %v2733
    %2753 = vst [vmem:[#allocation2 + $0x28] sm:$0xff] %v2734
    %2754 = vst [vmem:[#allocation2 + $0x30] sm:$0xff] %v2735
    %2755 = vst [vmem:[#allocation2 + $0x38] sm:$0xff] %v2736
    %2756 = vst [vmem:[#allocation2 + $0x40] sm:$0xff] %v2737
    %2757 = vst [vmem:[#allocation2 + $0x48] sm:$0xff] %v2738
    %2758 = vst [vmem:[#allocation2 + $0x50] sm:$0xff] %v2739
    %2759 = vst [vmem:[#allocation2 + $0x58] sm:$0xff] %v2740
    %2760 = vst [vmem:[#allocation2 + $0x60] sm:$0xff] %v2741
    %2761 = vst [vmem:[#allocation2 + $0x68] sm:$0xff] %v2742
    %2762 = vst [vmem:[#allocation2 + $0x70] sm:$0xff] %v2743
    %2763 = vst [vmem:[#allocation2 + $0x78] sm:$0xff] %v2744
    %2764 = vst [vmem:[#allocation2 + $0x80] sm:$0xff] %v2745
    %2765 = vst [vmem:[#allocation2 + $0x88] sm:$0xff] %v2746
    %2766 = vst [vmem:[#allocation2 + $0x90] sm:$0xff] %v2747
    // Predicated region
    $region30: #{generator_forward.1} parent=1 // pred_check
      _
    $region31: #{generator_forward.1} parent=1 // pred_check_branch
      %2768 = sbr.rel (0) target = $region33
    $region32: #{generator_forward.1} parent=1 // pred_region
      %s2770 = ssub.s32 2432, 2432
      %2771 = vsyncadd [#allocation3], %s2770
      %s2773 = sshll.u32 [#allocation2], 4
      %s2774 = int_to_ptr.vmem [resolvable:$true] %s2773
      %2776 = dma.vmem_to_hbm [thread:$0]  %s2774, 2432, %s7, [#allocation3]
    $region33: #{generator_forward.1} parent=1 // pred_fallthru
      _
    // Predicated region
    $region34: #{generator_forward.1} parent=1 // pred_check
      _
    $region35: #{generator_forward.1} parent=1 // pred_check_branch
      %2778 = sbr.rel (0) target = $region37
    $region36: #{generator_forward.1} parent=1 // pred_region
      %2779 = dma.done [#allocation3], 2432
    $region37: #{generator_forward.1} parent=1 // pred_fallthru
      _
    %2780 = vsyncpa [#allocation3], 1

</llo_original>
